<compile_context>
chip_gen: v7x
topology: tpu7x:2x2x1
jax: 0.10.0
libtpu: 0.0.40
codegen_flags: <defaults>
</compile_context>

<pallas_src>
import jax
import jax.numpy as jnp
from jax.experimental import pallas as pl
from jax.experimental.pallas import tpu as pltpu

LANE = 128


def qnetwork_kernel(emb_ref, st_ref,
                    we1_ref, be1_ref, we2_ref, be2_ref,
                    ws1_ref, bs1_ref, ws2_ref, bs2_ref,
                    wf1a_ref, wf1b_ref, bf1_ref,
                    wf2_ref, bf2_ref,
                    out_ref):
    # activations enter the MXU in bf16; accumulation / bias / ReLU stay f32
    emb = emb_ref[...].astype(jnp.bfloat16)
    st = st_ref[...].astype(jnp.bfloat16)

    # embedding branch
    h = jnp.dot(emb, we1_ref[...], preferred_element_type=jnp.float32) + be1_ref[...]
    h = jnp.maximum(h, 0.0).astype(jnp.bfloat16)
    h = jnp.dot(h, we2_ref[...], preferred_element_type=jnp.float32) + be2_ref[...]
    h = jnp.maximum(h, 0.0).astype(jnp.bfloat16)

    # state branch (lane-padded to 128; padded lanes stay exactly zero)
    s = jnp.dot(st, ws1_ref[...], preferred_element_type=jnp.float32) + bs1_ref[...]
    s = jnp.maximum(s, 0.0).astype(jnp.bfloat16)
    s = jnp.dot(s, ws2_ref[...], preferred_element_type=jnp.float32) + bs2_ref[...]
    s = jnp.maximum(s, 0.0).astype(jnp.bfloat16)

    # combined = concat([h, s], dim=1); fc1(combined) == h @ Wa + s @ Wb + b
    x = (jnp.dot(h, wf1a_ref[...], preferred_element_type=jnp.float32)
         + jnp.dot(s, wf1b_ref[...], preferred_element_type=jnp.float32)
         + bf1_ref[...])
    x = jnp.maximum(x, 0.0).astype(jnp.bfloat16)

    # fc2 (no activation); output lane-padded to 128, sliced outside the kernel
    out_ref[...] = (jnp.dot(x, wf2_ref[...], preferred_element_type=jnp.float32)
                    + bf2_ref[...])


def qnetwork_forward(embedding, state_info, params, *, block_batch=256):
    """Full QNetwork forward pass in one batch-tiled Pallas kernel."""
    batch, emb_dim = embedding.shape
    state_dim = state_info.shape[1]
    action_dim = params["action_dim"]
    out_pad = params["wf2"].shape[1]  # 128 (lane-padded)

    # batch tile: multiple of 8 sublanes, capped so tiles fit VMEM on v7x too
    tb = min(block_batch, max(8, ((batch + 7) // 8) * 8))
    batch_pad = pl.cdiv(batch, tb) * tb
    if batch_pad != batch:
        pad = batch_pad - batch
        embedding = jnp.pad(embedding, ((0, pad), (0, 0)))
        state_info = jnp.pad(state_info, ((0, pad), (0, 0)))

    weight_keys = ("we1", "be1", "we2", "be2",
                   "ws1", "bs1", "ws2", "bs2",
                   "wf1a", "wf1b", "bf1", "wf2", "bf2")
    weights = [params[k] for k in weight_keys]

    in_specs = [
        pl.BlockSpec((tb, emb_dim), lambda i: (i, 0)),
        pl.BlockSpec((tb, state_dim), lambda i: (i, 0)),
    ] + [
        # constant block index => weights stay resident in VMEM across the grid
        pl.BlockSpec(w.shape, lambda i: (0, 0)) for w in weights
    ]

    out = pl.pallas_call(
        qnetwork_kernel,
        out_shape=jax.ShapeDtypeStruct((batch_pad, out_pad), jnp.float32),
        grid=(batch_pad // tb,),
        in_specs=in_specs,
        out_specs=pl.BlockSpec((tb, out_pad), lambda i: (i, 0)),
        compiler_params=pltpu.CompilerParams(
            dimension_semantics=("parallel",)),
    )(embedding, state_info, *weights)

    # strip batch padding and output lane padding
    return out[:batch, :action_dim]


def init_params(key, embedding_dim, state_dim, action_dim):
    """Synthetic params. Returns (kernel_params, reference_params).

    Weights are quantized to bf16 once (shared by kernel and reference);
    kernel_params are additionally zero-padded to lane-dense shapes.
    """
    def linear(k, fan_in, fan_out):
        kw, kb = jax.random.split(k)
        bound = 1.0 / (fan_in ** 0.5)
        w = jax.random.uniform(kw, (fan_in, fan_out), jnp.float32, -bound, bound)
        b = jax.random.uniform(kb, (1, fan_out), jnp.float32, -bound, bound)
        return w, b

    keys = jax.random.split(key, 6)
    we1, be1 = linear(keys[0], embedding_dim, 512)   # embedding_fc1
    we2, be2 = linear(keys[1], 512, 256)             # embedding_fc2
    ws1, bs1 = linear(keys[2], state_dim, 64)        # state_fc1
    ws2, bs2 = linear(keys[3], 64, 32)               # state_fc2
    wf1, bf1 = linear(keys[4], 256 + 32, 256)        # fc1
    wf2, bf2 = linear(keys[5], 256, action_dim)      # fc2

    # quantize weights to bf16 (biases stay f32)
    we1, we2, ws1, ws2, wf1, wf2 = (w.astype(jnp.bfloat16)
                                    for w in (we1, we2, ws1, ws2, wf1, wf2))

    ref_params = {
        "we1": we1, "be1": be1, "we2": we2, "be2": be2,
        "ws1": ws1, "bs1": bs1, "ws2": ws2, "bs2": bs2,
        "wf1": wf1, "bf1": bf1, "wf2": wf2, "bf2": bf2,
    }

    def pad_lanes(x, cols):
        return jnp.pad(x, ((0, 0), (0, cols - x.shape[1])))

    def pad_rows(x, rows):
        return jnp.pad(x, ((0, rows - x.shape[0]), (0, 0)))

    kernel_params = {
        "we1": we1, "be1": be1,
        "we2": we2, "be2": be2,
        # state branch padded to lane-dense 128 (zeros are exact no-ops)
        "ws1": pad_lanes(ws1, LANE), "bs1": pad_lanes(bs1, LANE),
        "ws2": pad_lanes(pad_rows(ws2, LANE), LANE), "bs2": pad_lanes(bs2, LANE),
        # fc1 split: rows [0,256) hit the embedding branch, [256,288) the state
        # branch; the state half is row-padded to 128 to match padded s.
        "wf1a": wf1[:256, :],
        "wf1b": pad_rows(wf1[256:, :], LANE),
        "bf1": bf1,
        # fc2 padded to a lane-dense 128-wide output (avoids masked stores)
        "wf2": pad_lanes(wf2, LANE), "bf2": pad_lanes(bf2, LANE),
        "action_dim": action_dim,
    }
    return kernel_params, ref_params


def qnetwork_reference(embedding, state_info, p):
    """Pure-JAX reference matching the PyTorch forward (f32 activations)."""
    f = lambda w: w.astype(jnp.float32)
    h = jax.nn.relu(embedding @ f(p["we1"]) + p["be1"])
    h = jax.nn.relu(h @ f(p["we2"]) + p["be2"])
    s = jax.nn.relu(state_info @ f(p["ws1"]) + p["bs1"])
    s = jax.nn.relu(s @ f(p["ws2"]) + p["bs2"])
    combined = jnp.concatenate([h, s], axis=1)
    x = jax.nn.relu(combined @ f(p["wf1"]) + p["bf1"])
    return x @ f(p["wf2"]) + p["bf2"]


if __name__ == "__main__":
    embedding_dim, state_dim, action_dim = 32, 8, 4
    batch = 2

    key = jax.random.PRNGKey(0)
    k_emb, k_state, k_params = jax.random.split(key, 3)

    embedding = jax.random.normal(k_emb, (batch, embedding_dim), jnp.float32)
    state_info = jax.random.normal(k_state, (batch, state_dim), jnp.float32)
    kernel_params, ref_params = init_params(
        k_params, embedding_dim, state_dim, action_dim)

    # TODO(synk): for per-environment-step inference, keep weights resident
    # across calls (cross-call prefetch) instead of re-sending them each call.
    out = qnetwork_forward(embedding, state_info, kernel_params)
    out = jax.block_until_ready(out)

    ref = qnetwork_reference(embedding, state_info, ref_params)
    assert out.shape == (batch, action_dim)
    # bf16 activation casts inside the kernel => loosened tolerance
    assert jnp.allclose(out, ref, atol=3e-2, rtol=3e-2), "mismatch vs reference"

    print("KERNEL_OK")
</pallas_src>

<mosaic_0001>
module attributes {stable_mosaic.version = 11 : i64} {
  func.func @qnetwork_kernel(%arg0: i32, %arg1: memref<8x32xf32, #tpu.memory_space<vmem>>, %arg2: memref<8x8xf32, #tpu.memory_space<vmem>>, %arg3: memref<32x512xbf16, #tpu.memory_space<vmem>>, %arg4: memref<1x512xf32, #tpu.memory_space<vmem>>, %arg5: memref<512x256xbf16, #tpu.memory_space<vmem>>, %arg6: memref<1x256xf32, #tpu.memory_space<vmem>>, %arg7: memref<8x128xbf16, #tpu.memory_space<vmem>>, %arg8: memref<1x128xf32, #tpu.memory_space<vmem>>, %arg9: memref<128x128xbf16, #tpu.memory_space<vmem>>, %arg10: memref<1x128xf32, #tpu.memory_space<vmem>>, %arg11: memref<256x256xbf16, #tpu.memory_space<vmem>>, %arg12: memref<128x256xbf16, #tpu.memory_space<vmem>>, %arg13: memref<1x256xf32, #tpu.memory_space<vmem>>, %arg14: memref<256x128xbf16, #tpu.memory_space<vmem>>, %arg15: memref<1x128xf32, #tpu.memory_space<vmem>>, %arg16: memref<8x128xf32, #tpu.memory_space<vmem>>) attributes {dimension_semantics = [#tpu.dimension_semantics<parallel>], iteration_bounds = array<i64: 1>, scalar_prefetch = 0 : i64, scratch_operands = 0 : i64, tpu.core_type = #tpu.core_type<tc>, window_params = [{transform_indices = @transform_0, window_bounds = array<i64: 8, 32>}, {transform_indices = @transform_1, window_bounds = array<i64: 8, 8>}, {pipeline_mode = #tpu.pipeline_mode<synchronous>, transform_indices = @transform_2, window_bounds = array<i64: 32, 512>}, {pipeline_mode = #tpu.pipeline_mode<synchronous>, transform_indices = @transform_3, window_bounds = array<i64: 1, 512>}, {pipeline_mode = #tpu.pipeline_mode<synchronous>, transform_indices = @transform_4, window_bounds = array<i64: 512, 256>}, {pipeline_mode = #tpu.pipeline_mode<synchronous>, transform_indices = @transform_5, window_bounds = array<i64: 1, 256>}, {pipeline_mode = #tpu.pipeline_mode<synchronous>, transform_indices = @transform_6, window_bounds = array<i64: 8, 128>}, {pipeline_mode = #tpu.pipeline_mode<synchronous>, transform_indices = @transform_7, window_bounds = array<i64: 1, 128>}, {pipeline_mode = #tpu.pipeline_mode<synchronous>, transform_indices = @transform_8, window_bounds = array<i64: 128, 128>}, {pipeline_mode = #tpu.pipeline_mode<synchronous>, transform_indices = @transform_9, window_bounds = array<i64: 1, 128>}, {pipeline_mode = #tpu.pipeline_mode<synchronous>, transform_indices = @transform_10, window_bounds = array<i64: 256, 256>}, {pipeline_mode = #tpu.pipeline_mode<synchronous>, transform_indices = @transform_11, window_bounds = array<i64: 128, 256>}, {pipeline_mode = #tpu.pipeline_mode<synchronous>, transform_indices = @transform_12, window_bounds = array<i64: 1, 256>}, {pipeline_mode = #tpu.pipeline_mode<synchronous>, transform_indices = @transform_13, window_bounds = array<i64: 256, 128>}, {pipeline_mode = #tpu.pipeline_mode<synchronous>, transform_indices = @transform_14, window_bounds = array<i64: 1, 128>}, {transform_indices = @transform_15, window_bounds = array<i64: 8, 128>}]} {
    %c0 = arith.constant 0 : index
    %c0_0 = arith.constant 0 : index
    %0 = vector.load %arg1[%c0, %c0_0] : memref<8x32xf32, #tpu.memory_space<vmem>>, vector<8x32xf32>
    %1 = arith.truncf %0 : vector<8x32xf32> to vector<8x32xbf16>
    %c0_1 = arith.constant 0 : index
    %c0_2 = arith.constant 0 : index
    %2 = vector.load %arg2[%c0_1, %c0_2] : memref<8x8xf32, #tpu.memory_space<vmem>>, vector<8x8xf32>
    %3 = arith.truncf %2 : vector<8x8xf32> to vector<8x8xbf16>
    %c0_3 = arith.constant 0 : index
    %c0_4 = arith.constant 0 : index
    %4 = vector.load %arg3[%c0_3, %c0_4] : memref<32x512xbf16, #tpu.memory_space<vmem>>, vector<32x512xbf16>
    %cst = arith.constant dense<0.000000e+00> : vector<8x512xf32>
    %5 = tpu.matmul %1, %4, %cst {dimension_numbers = #tpu.dot_dimension_numbers<[1], [0], [0], [1], [0, 0, 1, 1], [], []>} : vector<8x32xbf16>, vector<32x512xbf16>, vector<8x512xf32> -> vector<8x512xf32>
    %c0_5 = arith.constant 0 : index
    %c0_6 = arith.constant 0 : index
    %6 = vector.load %arg4[%c0_5, %c0_6] : memref<1x512xf32, #tpu.memory_space<vmem>>, vector<1x512xf32>
    %7 = vector.broadcast %6 : vector<1x512xf32> to vector<8x512xf32>
    %8 = arith.addf %5, %7 : vector<8x512xf32>
    %cst_7 = arith.constant 0.000000e+00 : f32
    %9 = vector.broadcast %cst_7 : f32 to vector<8x512xf32>
    %10 = arith.maximumf %8, %9 : vector<8x512xf32>
    %11 = arith.truncf %10 : vector<8x512xf32> to vector<8x512xbf16>
    %c0_8 = arith.constant 0 : index
    %c0_9 = arith.constant 0 : index
    %12 = vector.load %arg5[%c0_8, %c0_9] : memref<512x256xbf16, #tpu.memory_space<vmem>>, vector<512x256xbf16>
    %cst_10 = arith.constant dense<0.000000e+00> : vector<8x256xf32>
    %13 = tpu.matmul %11, %12, %cst_10 {dimension_numbers = #tpu.dot_dimension_numbers<[1], [0], [0], [1], [0, 0, 1, 1], [], []>} : vector<8x512xbf16>, vector<512x256xbf16>, vector<8x256xf32> -> vector<8x256xf32>
    %c0_11 = arith.constant 0 : index
    %c0_12 = arith.constant 0 : index
    %14 = vector.load %arg6[%c0_11, %c0_12] : memref<1x256xf32, #tpu.memory_space<vmem>>, vector<1x256xf32>
    %15 = vector.broadcast %14 : vector<1x256xf32> to vector<8x256xf32>
    %16 = arith.addf %13, %15 : vector<8x256xf32>
    %cst_13 = arith.constant 0.000000e+00 : f32
    %17 = vector.broadcast %cst_13 : f32 to vector<8x256xf32>
    %18 = arith.maximumf %16, %17 : vector<8x256xf32>
    %19 = arith.truncf %18 : vector<8x256xf32> to vector<8x256xbf16>
    %c0_14 = arith.constant 0 : index
    %c0_15 = arith.constant 0 : index
    %20 = vector.load %arg7[%c0_14, %c0_15] : memref<8x128xbf16, #tpu.memory_space<vmem>>, vector<8x128xbf16>
    %cst_16 = arith.constant dense<0.000000e+00> : vector<8x128xf32>
    %21 = tpu.matmul %3, %20, %cst_16 {dimension_numbers = #tpu.dot_dimension_numbers<[1], [0], [0], [1], [0, 0, 1, 1], [], []>} : vector<8x8xbf16>, vector<8x128xbf16>, vector<8x128xf32> -> vector<8x128xf32>
    %c0_17 = arith.constant 0 : index
    %c0_18 = arith.constant 0 : index
    %22 = vector.load %arg8[%c0_17, %c0_18] : memref<1x128xf32, #tpu.memory_space<vmem>>, vector<1x128xf32>
    %23 = vector.broadcast %22 : vector<1x128xf32> to vector<8x128xf32>
    %24 = arith.addf %21, %23 : vector<8x128xf32>
    %cst_19 = arith.constant 0.000000e+00 : f32
    %25 = vector.broadcast %cst_19 : f32 to vector<8x128xf32>
    %26 = arith.maximumf %24, %25 : vector<8x128xf32>
    %27 = arith.truncf %26 : vector<8x128xf32> to vector<8x128xbf16>
    %c0_20 = arith.constant 0 : index
    %c0_21 = arith.constant 0 : index
    %28 = vector.load %arg9[%c0_20, %c0_21] : memref<128x128xbf16, #tpu.memory_space<vmem>>, vector<128x128xbf16>
    %cst_22 = arith.constant dense<0.000000e+00> : vector<8x128xf32>
    %29 = tpu.matmul %27, %28, %cst_22 {dimension_numbers = #tpu.dot_dimension_numbers<[1], [0], [0], [1], [0, 0, 1, 1], [], []>} : vector<8x128xbf16>, vector<128x128xbf16>, vector<8x128xf32> -> vector<8x128xf32>
    %c0_23 = arith.constant 0 : index
    %c0_24 = arith.constant 0 : index
    %30 = vector.load %arg10[%c0_23, %c0_24] : memref<1x128xf32, #tpu.memory_space<vmem>>, vector<1x128xf32>
    %31 = vector.broadcast %30 : vector<1x128xf32> to vector<8x128xf32>
    %32 = arith.addf %29, %31 : vector<8x128xf32>
    %cst_25 = arith.constant 0.000000e+00 : f32
    %33 = vector.broadcast %cst_25 : f32 to vector<8x128xf32>
    %34 = arith.maximumf %32, %33 : vector<8x128xf32>
    %35 = arith.truncf %34 : vector<8x128xf32> to vector<8x128xbf16>
    %c0_26 = arith.constant 0 : index
    %c0_27 = arith.constant 0 : index
    %36 = vector.load %arg11[%c0_26, %c0_27] : memref<256x256xbf16, #tpu.memory_space<vmem>>, vector<256x256xbf16>
    %cst_28 = arith.constant dense<0.000000e+00> : vector<8x256xf32>
    %37 = tpu.matmul %19, %36, %cst_28 {dimension_numbers = #tpu.dot_dimension_numbers<[1], [0], [0], [1], [0, 0, 1, 1], [], []>} : vector<8x256xbf16>, vector<256x256xbf16>, vector<8x256xf32> -> vector<8x256xf32>
    %c0_29 = arith.constant 0 : index
    %c0_30 = arith.constant 0 : index
    %38 = vector.load %arg12[%c0_29, %c0_30] : memref<128x256xbf16, #tpu.memory_space<vmem>>, vector<128x256xbf16>
    %cst_31 = arith.constant dense<0.000000e+00> : vector<8x256xf32>
    %39 = tpu.matmul %35, %38, %cst_31 {dimension_numbers = #tpu.dot_dimension_numbers<[1], [0], [0], [1], [0, 0, 1, 1], [], []>} : vector<8x128xbf16>, vector<128x256xbf16>, vector<8x256xf32> -> vector<8x256xf32>
    %40 = arith.addf %37, %39 : vector<8x256xf32>
    %c0_32 = arith.constant 0 : index
    %c0_33 = arith.constant 0 : index
    %41 = vector.load %arg13[%c0_32, %c0_33] : memref<1x256xf32, #tpu.memory_space<vmem>>, vector<1x256xf32>
    %42 = vector.broadcast %41 : vector<1x256xf32> to vector<8x256xf32>
    %43 = arith.addf %40, %42 : vector<8x256xf32>
    %cst_34 = arith.constant 0.000000e+00 : f32
    %44 = vector.broadcast %cst_34 : f32 to vector<8x256xf32>
    %45 = arith.maximumf %43, %44 : vector<8x256xf32>
    %46 = arith.truncf %45 : vector<8x256xf32> to vector<8x256xbf16>
    %c0_35 = arith.constant 0 : index
    %c0_36 = arith.constant 0 : index
    %47 = vector.load %arg14[%c0_35, %c0_36] : memref<256x128xbf16, #tpu.memory_space<vmem>>, vector<256x128xbf16>
    %cst_37 = arith.constant dense<0.000000e+00> : vector<8x128xf32>
    %48 = tpu.matmul %46, %47, %cst_37 {dimension_numbers = #tpu.dot_dimension_numbers<[1], [0], [0], [1], [0, 0, 1, 1], [], []>} : vector<8x256xbf16>, vector<256x128xbf16>, vector<8x128xf32> -> vector<8x128xf32>
    %c0_38 = arith.constant 0 : index
    %c0_39 = arith.constant 0 : index
    %49 = vector.load %arg15[%c0_38, %c0_39] : memref<1x128xf32, #tpu.memory_space<vmem>>, vector<1x128xf32>
    %50 = vector.broadcast %49 : vector<1x128xf32> to vector<8x128xf32>
    %51 = arith.addf %48, %50 : vector<8x128xf32>
    %c0_40 = arith.constant 0 : index
    %c0_41 = arith.constant 0 : index
    %52 = vector.load %arg16[%c0_40, %c0_41] : memref<8x128xf32, #tpu.memory_space<vmem>>, vector<8x128xf32>
    tpu.vector_store %arg16[%c0_40, %c0_41], %51 {strides = array<i32>} : memref<8x128xf32, #tpu.memory_space<vmem>>, vector<8x128xf32>,
    return
  }
  func.func @transform_0(%arg0: i32) -> (i32, i32) {
    %c0_i32 = arith.constant 0 : i32
    %c0_i32_0 = arith.constant 0 : i32
    return %arg0, %c0_i32 : i32, i32
  }
  func.func @transform_1(%arg0: i32) -> (i32, i32) {
    %c0_i32 = arith.constant 0 : i32
    %c0_i32_0 = arith.constant 0 : i32
    return %arg0, %c0_i32 : i32, i32
  }
  func.func @transform_2(%arg0: i32) -> (i32, i32) {
    %c0_i32 = arith.constant 0 : i32
    %c0_i32_0 = arith.constant 0 : i32
    %c0_i32_1 = arith.constant 0 : i32
    return %c0_i32, %c0_i32_0 : i32, i32
  }
  func.func @transform_3(%arg0: i32) -> (i32, i32) {
    %c0_i32 = arith.constant 0 : i32
    %c0_i32_0 = arith.constant 0 : i32
    %c0_i32_1 = arith.constant 0 : i32
    return %c0_i32, %c0_i32_0 : i32, i32
  }
  func.func @transform_4(%arg0: i32) -> (i32, i32) {
    %c0_i32 = arith.constant 0 : i32
    %c0_i32_0 = arith.constant 0 : i32
    %c0_i32_1 = arith.constant 0 : i32
    return %c0_i32, %c0_i32_0 : i32, i32
  }
  func.func @transform_5(%arg0: i32) -> (i32, i32) {
    %c0_i32 = arith.constant 0 : i32
    %c0_i32_0 = arith.constant 0 : i32
    %c0_i32_1 = arith.constant 0 : i32
    return %c0_i32, %c0_i32_0 : i32, i32
  }
  func.func @transform_6(%arg0: i32) -> (i32, i32) {
    %c0_i32 = arith.constant 0 : i32
    %c0_i32_0 = arith.constant 0 : i32
    %c0_i32_1 = arith.constant 0 : i32
    return %c0_i32, %c0_i32_0 : i32, i32
  }
  func.func @transform_7(%arg0: i32) -> (i32, i32) {
    %c0_i32 = arith.constant 0 : i32
    %c0_i32_0 = arith.constant 0 : i32
    %c0_i32_1 = arith.constant 0 : i32
    return %c0_i32, %c0_i32_0 : i32, i32
  }
  func.func @transform_8(%arg0: i32) -> (i32, i32) {
    %c0_i32 = arith.constant 0 : i32
    %c0_i32_0 = arith.constant 0 : i32
    %c0_i32_1 = arith.constant 0 : i32
    return %c0_i32, %c0_i32_0 : i32, i32
  }
  func.func @transform_9(%arg0: i32) -> (i32, i32) {
    %c0_i32 = arith.constant 0 : i32
    %c0_i32_0 = arith.constant 0 : i32
    %c0_i32_1 = arith.constant 0 : i32
    return %c0_i32, %c0_i32_0 : i32, i32
  }
  func.func @transform_10(%arg0: i32) -> (i32, i32) {
    %c0_i32 = arith.constant 0 : i32
    %c0_i32_0 = arith.constant 0 : i32
    %c0_i32_1 = arith.constant 0 : i32
    return %c0_i32, %c0_i32_0 : i32, i32
  }
  func.func @transform_11(%arg0: i32) -> (i32, i32) {
    %c0_i32 = arith.constant 0 : i32
    %c0_i32_0 = arith.constant 0 : i32
    %c0_i32_1 = arith.constant 0 : i32
    return %c0_i32, %c0_i32_0 : i32, i32
  }
  func.func @transform_12(%arg0: i32) -> (i32, i32) {
    %c0_i32 = arith.constant 0 : i32
    %c0_i32_0 = arith.constant 0 : i32
    %c0_i32_1 = arith.constant 0 : i32
    return %c0_i32, %c0_i32_0 : i32, i32
  }
  func.func @transform_13(%arg0: i32) -> (i32, i32) {
    %c0_i32 = arith.constant 0 : i32
    %c0_i32_0 = arith.constant 0 : i32
    %c0_i32_1 = arith.constant 0 : i32
    return %c0_i32, %c0_i32_0 : i32, i32
  }
  func.func @transform_14(%arg0: i32) -> (i32, i32) {
    %c0_i32 = arith.constant 0 : i32
    %c0_i32_0 = arith.constant 0 : i32
    %c0_i32_1 = arith.constant 0 : i32
    return %c0_i32, %c0_i32_0 : i32, i32
  }
  func.func @transform_15(%arg0: i32) -> (i32, i32) {
    %c0_i32 = arith.constant 0 : i32
    %c0_i32_0 = arith.constant 0 : i32
    return %arg0, %c0_i32 : i32, i32
  }
}

</mosaic_0001>

<llo_original>
// kernel: tpu_custom_call.1
$region0: #{tpu_custom_call.1}
  #allocation0 [shape = 'u32[]', space=smem, size = 0x4, offset = 0x4, fixed_abs, tag = 'smem constant byte address 0x4 - core index']
  #allocation1 [shape = 'u32[144,128]{1,0:T(1,128)}', space=vmem, size = 0x12000, scoped, tag = 'internal scratch']
  %s0 = inlined_call_operand.hbm [shape: f32[8,32], index: 0, kind: input, shape index: {}]
  %s1 = inlined_call_operand.hbm [shape: f32[8,8], index: 1, kind: input, shape index: {}]
  %s2 = inlined_call_operand.hbm [shape: bf16[32,512], index: 2, kind: input, shape index: {}]
  %s3 = inlined_call_operand.vmem [shape: f32[1,512], index: 3, kind: input, shape index: {}]
  %s4 = inlined_call_operand.hbm [shape: bf16[512,256], index: 4, kind: input, shape index: {}]
  %s5 = inlined_call_operand.vmem [shape: f32[1,256], index: 5, kind: input, shape index: {}]
  %s6 = inlined_call_operand.vmem [shape: bf16[8,128], index: 6, kind: input, shape index: {}]
  %s7 = inlined_call_operand.vmem [shape: f32[1,128], index: 7, kind: input, shape index: {}]
  %s8 = inlined_call_operand.hbm [shape: bf16[128,128], index: 8, kind: input, shape index: {}]
  %s9 = inlined_call_operand.vmem [shape: f32[1,128], index: 9, kind: input, shape index: {}]
  %s10 = inlined_call_operand.hbm [shape: bf16[256,256], index: 10, kind: input, shape index: {}]
  %s11 = inlined_call_operand.hbm [shape: bf16[128,256], index: 11, kind: input, shape index: {}]
  %s12 = inlined_call_operand.vmem [shape: f32[1,256], index: 12, kind: input, shape index: {}]
  %s13 = inlined_call_operand.hbm [shape: bf16[256,128], index: 13, kind: input, shape index: {}]
  %s14 = inlined_call_operand.vmem [shape: f32[1,128], index: 14, kind: input, shape index: {}]
  %s15 = inlined_call_operand.hbm [shape: f32[8,128], index: 15, kind: output, shape index: {}]
  %s16 = sld [smem:[#allocation0]]
  $region102: #{tpu_custom_call.1} parent=0
    _
  %s18 = ssub.s32 1, %s16
  %s19 = scalar_select 0, %s18, %s16
  $region1: #{tpu_custom_call.1} parent=0
    #allocation2 [shape = 'u8[4096]{0}', space=vmem, size = 0x1000, scoped, tag = 'input window, operand 0, single buffered']
    #allocation3 [shape = 's32[1]{0}', space=sflag, size = 0x4, scoped, tag = 'scoped memory for tpu_custom_call.1']
    #allocation4 [shape = 's32[1]{0}', space=sflag, size = 0x4, scoped, tag = 'scoped memory for tpu_custom_call.1']
    #allocation5 [shape = 'u8[4096]{0}', space=vmem, size = 0x1000, scoped, tag = 'input window, operand 1, single buffered']
    #allocation6 [shape = 's32[1]{0}', space=sflag, size = 0x4, scoped, tag = 'scoped memory for tpu_custom_call.1']
    #allocation7 [shape = 'u8[32768]{0}', space=vmem, size = 0x8000, scoped, tag = 'input window, operand 2, single buffered']
    #allocation8 [shape = 'u8[262144]{0}', space=vmem, size = 0x40000, scoped, tag = 'input window, operand 4, single buffered']
    #allocation9 [shape = 's32[1]{0}', space=sflag, size = 0x4, scoped, tag = 'scoped memory for tpu_custom_call.1']
    #allocation10 [shape = 'u8[32768]{0}', space=vmem, size = 0x8000, scoped, tag = 'input window, operand 8, single buffered']
    #allocation11 [shape = 'u8[131072]{0}', space=vmem, size = 0x20000, scoped, tag = 'input window, operand 10, single buffered']
    #allocation12 [shape = 's32[1]{0}', space=sflag, size = 0x4, scoped, tag = 'scoped memory for tpu_custom_call.1']
    #allocation13 [shape = 'u8[65536]{0}', space=vmem, size = 0x10000, scoped, tag = 'input window, operand 11, single buffered']
    #allocation14 [shape = 'u8[65536]{0}', space=vmem, size = 0x10000, scoped, tag = 'input window, operand 13, single buffered']
    #allocation15 [shape = 's32[1]{0}', space=sflag, size = 0x4, scoped, tag = 'scoped memory for tpu_custom_call.1']
    #allocation16 [shape = 'u8[4096]{0}', space=vmem, size = 0x1000, scoped, tag = 'output window, operand 0, single buffered']
    %20 = vsyncpa [#allocation3], 0
    %21 = vsyncpa [#allocation6], 0
    %22 = vsyncpa [#allocation9], 0
    %23 = vsyncpa [#allocation12], 0
    %24 = vsyncpa [#allocation15], 0
    %25 = vsyncpa [#allocation4], 0
    // Predicated region
    $region2: #{tpu_custom_call.1} parent=1 // pred_check
      _
    $region3: #{tpu_custom_call.1} parent=1 // pred_check_branch
      %27 = sbr.rel (0) target = $region5
    $region4: #{tpu_custom_call.1} parent=1 // pred_region
      %s29 = ssub.s32 128, 128
      %30 = vsyncadd [#allocation3], %s29
      %s32 = sshll.u32 [#allocation2], 4
      %s33 = int_to_ptr.vmem [resolvable:$true] %s32
      %35 = dma.hbm_to_vmem [thread:$0]  %s0, 128, %s33, [#allocation3]
    $region5: #{tpu_custom_call.1} parent=1 // pred_fallthru
      _
    // Predicated region
    $region6: #{tpu_custom_call.1} parent=1 // pred_check
      _
    $region7: #{tpu_custom_call.1} parent=1 // pred_check_branch
      %37 = sbr.rel (0) target = $region9
    $region8: #{tpu_custom_call.1} parent=1 // pred_region
      %s39 = ssub.s32 128, 128
      %40 = vsyncadd [#allocation6], %s39
      %s42 = sshll.u32 [#allocation5], 4
      %s43 = int_to_ptr.vmem [resolvable:$true] %s42
      %45 = dma.hbm_to_vmem [thread:$0]  %s1, 128, %s43, [#allocation6]
    $region9: #{tpu_custom_call.1} parent=1 // pred_fallthru
      _
    // Predicated region
    $region10: #{tpu_custom_call.1} parent=1 // pred_check
      _
    $region11: #{tpu_custom_call.1} parent=1 // pred_check_branch
      %47 = sbr.rel (0) target = $region13
    $region12: #{tpu_custom_call.1} parent=1 // pred_region
      %s49 = ssub.s32 1024, 1024
      %50 = vsyncadd [#allocation6], %s49
      %s51 = sshll.u32 [#allocation7], 4
      %s52 = int_to_ptr.vmem [resolvable:$true] %s51
      %57 = dma.hbm_to_vmem [thread:$0]  %s2, 1024, %s52, [#allocation6], 256, 256, 16
    $region13: #{tpu_custom_call.1} parent=1 // pred_fallthru
      _
    // Predicated region
    $region14: #{tpu_custom_call.1} parent=1 // pred_check
      _
    $region15: #{tpu_custom_call.1} parent=1 // pred_check_branch
      %59 = sbr.rel (0) target = $region17
    $region16: #{tpu_custom_call.1} parent=1 // pred_region
      _
    $region17: #{tpu_custom_call.1} parent=1 // pred_fallthru
      _
    // Predicated region
    $region18: #{tpu_custom_call.1} parent=1 // pred_check
      _
    $region19: #{tpu_custom_call.1} parent=1 // pred_check_branch
      %61 = sbr.rel (0) target = $region21
    $region20: #{tpu_custom_call.1} parent=1 // pred_region
      %s63 = ssub.s32 8192, 8192
      %64 = vsyncadd [#allocation9], %s63
      %s65 = sshll.u32 [#allocation8], 4
      %s66 = int_to_ptr.vmem [resolvable:$true] %s65
      %71 = dma.hbm_to_vmem [thread:$0]  %s4, 8192, %s66, [#allocation9], 128, 128, 8
    $region21: #{tpu_custom_call.1} parent=1 // pred_fallthru
      _
    // Predicated region
    $region22: #{tpu_custom_call.1} parent=1 // pred_check
      _
    $region23: #{tpu_custom_call.1} parent=1 // pred_check_branch
      %73 = sbr.rel (0) target = $region25
    $region24: #{tpu_custom_call.1} parent=1 // pred_region
      _
    $region25: #{tpu_custom_call.1} parent=1 // pred_fallthru
      _
    // Predicated region
    $region26: #{tpu_custom_call.1} parent=1 // pred_check
      _
    $region27: #{tpu_custom_call.1} parent=1 // pred_check_branch
      %75 = sbr.rel (0) target = $region29
    $region28: #{tpu_custom_call.1} parent=1 // pred_region
      _
    $region29: #{tpu_custom_call.1} parent=1 // pred_fallthru
      _
    // Predicated region
    $region30: #{tpu_custom_call.1} parent=1 // pred_check
      _
    $region31: #{tpu_custom_call.1} parent=1 // pred_check_branch
      %77 = sbr.rel (0) target = $region33
    $region32: #{tpu_custom_call.1} parent=1 // pred_region
      _
    $region33: #{tpu_custom_call.1} parent=1 // pred_fallthru
      _
    // Predicated region
    $region34: #{tpu_custom_call.1} parent=1 // pred_check
      _
    $region35: #{tpu_custom_call.1} parent=1 // pred_check_branch
      %79 = sbr.rel (0) target = $region37
    $region36: #{tpu_custom_call.1} parent=1 // pred_region
      %s81 = ssub.s32 1024, 1024
      %82 = vsyncadd [#allocation9], %s81
      %s83 = sshll.u32 [#allocation10], 4
      %s84 = int_to_ptr.vmem [resolvable:$true] %s83
      %89 = dma.hbm_to_vmem [thread:$0]  %s8, 1024, %s84, [#allocation9], 64, 64, 4
    $region37: #{tpu_custom_call.1} parent=1 // pred_fallthru
      _
    // Predicated region
    $region38: #{tpu_custom_call.1} parent=1 // pred_check
      _
    $region39: #{tpu_custom_call.1} parent=1 // pred_check_branch
      %91 = sbr.rel (0) target = $region41
    $region40: #{tpu_custom_call.1} parent=1 // pred_region
      _
    $region41: #{tpu_custom_call.1} parent=1 // pred_fallthru
      _
    // Predicated region
    $region42: #{tpu_custom_call.1} parent=1 // pred_check
      _
    $region43: #{tpu_custom_call.1} parent=1 // pred_check_branch
      %93 = sbr.rel (0) target = $region45
    $region44: #{tpu_custom_call.1} parent=1 // pred_region
      %s95 = ssub.s32 4096, 4096
      %96 = vsyncadd [#allocation12], %s95
      %s97 = sshll.u32 [#allocation11], 4
      %s98 = int_to_ptr.vmem [resolvable:$true] %s97
      %103 = dma.hbm_to_vmem [thread:$0]  %s10, 4096, %s98, [#allocation12], 128, 128, 8
    $region45: #{tpu_custom_call.1} parent=1 // pred_fallthru
      _
    // Predicated region
    $region46: #{tpu_custom_call.1} parent=1 // pred_check
      _
    $region47: #{tpu_custom_call.1} parent=1 // pred_check_branch
      %105 = sbr.rel (0) target = $region49
    $region48: #{tpu_custom_call.1} parent=1 // pred_region
      %s107 = ssub.s32 2048, 2048
      %108 = vsyncadd [#allocation12], %s107
      %s109 = sshll.u32 [#allocation13], 4
      %s110 = int_to_ptr.vmem [resolvable:$true] %s109
      %115 = dma.hbm_to_vmem [thread:$0]  %s11, 2048, %s110, [#allocation12], 128, 128, 8
    $region49: #{tpu_custom_call.1} parent=1 // pred_fallthru
      _
    // Predicated region
    $region50: #{tpu_custom_call.1} parent=1 // pred_check
      _
    $region51: #{tpu_custom_call.1} parent=1 // pred_check_branch
      %117 = sbr.rel (0) target = $region53
    $region52: #{tpu_custom_call.1} parent=1 // pred_region
      _
    $region53: #{tpu_custom_call.1} parent=1 // pred_fallthru
      _
    // Predicated region
    $region54: #{tpu_custom_call.1} parent=1 // pred_check
      _
    $region55: #{tpu_custom_call.1} parent=1 // pred_check_branch
      %119 = sbr.rel (0) target = $region57
    $region56: #{tpu_custom_call.1} parent=1 // pred_region
      %s121 = ssub.s32 2048, 2048
      %122 = vsyncadd [#allocation15], %s121
      %s123 = sshll.u32 [#allocation14], 4
      %s124 = int_to_ptr.vmem [resolvable:$true] %s123
      %129 = dma.hbm_to_vmem [thread:$0]  %s13, 2048, %s124, [#allocation15], 64, 64, 4
    $region57: #{tpu_custom_call.1} parent=1 // pred_fallthru
      _
    // Predicated region
    $region58: #{tpu_custom_call.1} parent=1 // pred_check
      _
    $region59: #{tpu_custom_call.1} parent=1 // pred_check_branch
      %131 = sbr.rel (0) target = $region61
    $region60: #{tpu_custom_call.1} parent=1 // pred_region
      _
    $region61: #{tpu_custom_call.1} parent=1 // pred_fallthru
      _
    // Predicated region
    $region62: #{tpu_custom_call.1} parent=1 // pred_check
      _
    $region63: #{tpu_custom_call.1} parent=1 // pred_check_branch
      %133 = sbr.rel (0) target = $region65
    $region64: #{tpu_custom_call.1} parent=1 // pred_region
      %134 = dma.done [#allocation3], 128
    $region65: #{tpu_custom_call.1} parent=1 // pred_fallthru
      _
    // Predicated region
    $region66: #{tpu_custom_call.1} parent=1 // pred_check
      _
    $region67: #{tpu_custom_call.1} parent=1 // pred_check_branch
      %136 = sbr.rel (0) target = $region69
    $region68: #{tpu_custom_call.1} parent=1 // pred_region
      %137 = dma.done [#allocation6], 128
    $region69: #{tpu_custom_call.1} parent=1 // pred_fallthru
      _
    // Predicated region
    $region70: #{tpu_custom_call.1} parent=1 // pred_check
      _
    $region71: #{tpu_custom_call.1} parent=1 // pred_check_branch
      %139 = sbr.rel (0) target = $region73
    $region72: #{tpu_custom_call.1} parent=1 // pred_region
      %140 = dma.done [#allocation6], 1024
    $region73: #{tpu_custom_call.1} parent=1 // pred_fallthru
      _
    // Predicated region
    $region74: #{tpu_custom_call.1} parent=1 // pred_check
      _
    $region75: #{tpu_custom_call.1} parent=1 // pred_check_branch
      %142 = sbr.rel (0) target = $region77
    $region76: #{tpu_custom_call.1} parent=1 // pred_region
      %143 = dma.done [#allocation9], 8192
    $region77: #{tpu_custom_call.1} parent=1 // pred_fallthru
      _
    // Predicated region
    $region78: #{tpu_custom_call.1} parent=1 // pred_check
      _
    $region79: #{tpu_custom_call.1} parent=1 // pred_check_branch
      %145 = sbr.rel (0) target = $region81
    $region80: #{tpu_custom_call.1} parent=1 // pred_region
      %146 = dma.done [#allocation9], 1024
    $region81: #{tpu_custom_call.1} parent=1 // pred_fallthru
      _
    // Predicated region
    $region82: #{tpu_custom_call.1} parent=1 // pred_check
      _
    $region83: #{tpu_custom_call.1} parent=1 // pred_check_branch
      %148 = sbr.rel (0) target = $region85
    $region84: #{tpu_custom_call.1} parent=1 // pred_region
      %149 = dma.done [#allocation12], 4096
    $region85: #{tpu_custom_call.1} parent=1 // pred_fallthru
      _
    // Predicated region
    $region86: #{tpu_custom_call.1} parent=1 // pred_check
      _
    $region87: #{tpu_custom_call.1} parent=1 // pred_check_branch
      %151 = sbr.rel (0) target = $region89
    $region88: #{tpu_custom_call.1} parent=1 // pred_region
      %152 = dma.done [#allocation12], 2048
    $region89: #{tpu_custom_call.1} parent=1 // pred_fallthru
      _
    // Predicated region
    $region90: #{tpu_custom_call.1} parent=1 // pred_check
      _
    $region91: #{tpu_custom_call.1} parent=1 // pred_check_branch
      %154 = sbr.rel (0) target = $region93
    $region92: #{tpu_custom_call.1} parent=1 // pred_region
      %155 = dma.done [#allocation15], 2048
    $region93: #{tpu_custom_call.1} parent=1 // pred_fallthru
      _
    %v157 = vld [vmem:[#allocation2] sm:$0xff]
    %v158 = vpack.c.bf16 %v157, %v157
    %v159 = vld [vmem:[#allocation5] sm:$0xff]
    %v160 = vpack.c.bf16 %v159, %v159
    %v161 = vld [vmem:[#allocation7] sm:$0xff]
    %v162 = vld [vmem:[#allocation7 + $0x8] sm:$0xff]
    %v163 = vld [vmem:[#allocation7 + $0x10] sm:$0xff]
    %v164 = vld [vmem:[#allocation7 + $0x18] sm:$0xff]
    %v165 = vld [vmem:[#allocation7 + $0x20] sm:$0xff]
    %v166 = vld [vmem:[#allocation7 + $0x28] sm:$0xff]
    %v167 = vld [vmem:[#allocation7 + $0x30] sm:$0xff]
    %v168 = vld [vmem:[#allocation7 + $0x38] sm:$0xff]
    %v169 = vld [vmem:[%s3] sm:$0xf]
    %v171 = vlaneseq
    %v172 = vshrl.u32 %v171, 7
    %v173 = vsub.s32 0, %v172
    %v174 = vrot.slane %v169, %v173
    %v175 = vlaneseq
    %v176 = vshrl.u32 %v175, 7
    %v177 = vsub.s32 1, %v176
    %v178 = vrot.slane %v169, %v177
    %v179 = vlaneseq
    %v180 = vshrl.u32 %v179, 7
    %v181 = vsub.s32 2, %v180
    %v182 = vrot.slane %v169, %v181
    %v183 = vlaneseq
    %v184 = vshrl.u32 %v183, 7
    %v185 = vsub.s32 3, %v184
    %v186 = vrot.slane %v169, %v185
    %v199 = vunpack.c.l.b16 %v161
    %v200 = vunpack.c.h.b16 %v161
    %v201 = vunpack.c.l.b16 %v162
    %v202 = vunpack.c.h.b16 %v162
    %v203 = vunpack.c.l.b16 %v163
    %v204 = vunpack.c.h.b16 %v163
    %v205 = vunpack.c.l.b16 %v164
    %v206 = vunpack.c.h.b16 %v164
    %v207 = vunpack.c.l.b16 %v165
    %v208 = vunpack.c.h.b16 %v165
    %v209 = vunpack.c.l.b16 %v166
    %v210 = vunpack.c.h.b16 %v166
    %v211 = vunpack.c.l.b16 %v167
    %v212 = vunpack.c.h.b16 %v167
    %v213 = vunpack.c.l.b16 %v168
    %v214 = vunpack.c.h.b16 %v168
    %v215 = vpack.c.b16 %v203, %v199
    %v216 = vpack.c.b16 %v204, %v200
    %v217 = vpack.c.b16 %v205, %v201
    %v218 = vpack.c.b16 %v206, %v202
    %v219 = vpack.c.b16 %v211, %v207
    %v220 = vpack.c.b16 %v212, %v208
    %v221 = vpack.c.b16 %v213, %v209
    %v222 = vpack.c.b16 %v214, %v210
    %vm231 = vcmask 261120
    %v233 = vsel %vm231, %v158, 0
    %235 = vmatprep.subr.bf16.mxu0 %v216
    %236 = vmatpush1.bf16.msra.mxu0 %v215
    %237 = vmatprep.subr.bf16.mxu0 %v220
    %238 = vmatpush1.bf16.msra.mxu0 %v219
    %239 = vmatprep.subr.bf16.mxu0 0
    %240 = vmatpush1.bf16.msra.mxu0 0
    %241 = vmatprep.subr.bf16.mxu0 0
    %242 = vmatpush1.bf16.msra.mxu0 0
    %243 = vmatprep.subr.bf16.mxu0 0
    %244 = vmatpush1.bf16.msra.mxu0 0
    %245 = vmatprep.subr.bf16.mxu0 0
    %246 = vmatpush1.bf16.msra.mxu0 0
    %247 = vmatprep.subr.bf16.mxu0 0
    %248 = vmatpush1.bf16.msra.mxu0 0
    %249 = vmatprep.subr.bf16.mxu0 0
    %250 = vmatpush1.bf16.msra.mxu0 0
    %251 = vmatprep.subr.bf16.mxu0 0
    %252 = vmatpush1.bf16.msra.mxu0 0
    %253 = vmatprep.subr.bf16.mxu0 0
    %254 = vmatpush1.bf16.msra.mxu0 0
    %255 = vmatprep.subr.bf16.mxu0 0
    %256 = vmatpush1.bf16.msra.mxu0 0
    %257 = vmatprep.subr.bf16.mxu0 0
    %258 = vmatpush1.bf16.msra.mxu0 0
    %259 = vmatprep.subr.bf16.mxu0 0
    %260 = vmatpush1.bf16.msra.mxu0 0
    %261 = vmatprep.subr.bf16.mxu0 0
    %262 = vmatpush1.bf16.msra.mxu0 0
    %263 = vmatprep.subr.bf16.mxu0 0
    %264 = vmatpush1.bf16.msra.mxu0 0
    %265 = vmatprep.subr.bf16.mxu0 0
    %266 = vmatpush1.bf16.msra.mxu0 0
    %267 = vmatprep.mubr.bf16.mxu0 0
    %268 = vmatmul.mubr.bf16.gmra.mrb[0].mxu0 %v233
    %v269 = vpop.f32.mrb[0].mxu0
    %v270 = vadd.f32 %v174, %v269
    %v271 = vpop.f32.mrb[0].mxu0
    %v272 = vadd.f32 %v178, %v271
    %v273 = vpop.f32.mrb[0].mxu0
    %v274 = vpop.f32.mrb[0].mxu0
    %275 = vdwg.mxu0
    %276 = vmatprep.subr.bf16.mxu0 %v218
    %277 = vmatpush1.bf16.msra.mxu0 %v217
    %278 = vmatprep.subr.bf16.mxu0 %v222
    %279 = vmatpush1.bf16.msra.mxu0 %v221
    %280 = vmatprep.subr.bf16.mxu0 0
    %281 = vmatpush1.bf16.msra.mxu0 0
    %282 = vmatprep.subr.bf16.mxu0 0
    %283 = vmatpush1.bf16.msra.mxu0 0
    %284 = vmatprep.subr.bf16.mxu0 0
    %285 = vmatpush1.bf16.msra.mxu0 0
    %286 = vmatprep.subr.bf16.mxu0 0
    %287 = vmatpush1.bf16.msra.mxu0 0
    %288 = vmatprep.subr.bf16.mxu0 0
    %289 = vmatpush1.bf16.msra.mxu0 0
    %290 = vmatprep.subr.bf16.mxu0 0
    %291 = vmatpush1.bf16.msra.mxu0 0
    %292 = vmatprep.subr.bf16.mxu0 0
    %293 = vmatpush1.bf16.msra.mxu0 0
    %294 = vmatprep.subr.bf16.mxu0 0
    %295 = vmatpush1.bf16.msra.mxu0 0
    %296 = vmatprep.subr.bf16.mxu0 0
    %297 = vmatpush1.bf16.msra.mxu0 0
    %298 = vmatprep.subr.bf16.mxu0 0
    %299 = vmatpush1.bf16.msra.mxu0 0
    %300 = vmatprep.subr.bf16.mxu0 0
    %301 = vmatpush1.bf16.msra.mxu0 0
    %302 = vmatprep.subr.bf16.mxu0 0
    %303 = vmatpush1.bf16.msra.mxu0 0
    %304 = vmatprep.subr.bf16.mxu0 0
    %305 = vmatpush1.bf16.msra.mxu0 0
    %306 = vmatprep.subr.bf16.mxu0 0
    %307 = vmatpush1.bf16.msra.mxu0 0
    %308 = vmatprep.mubr.bf16.mxu0 0
    %309 = vmatmul.mubr.bf16.gmra.mrb[0].mxu0 %v233
    %v310 = vpop.f32.mrb[0].mxu0
    %v311 = vadd.f32 %v182, %v310
    %v312 = vpop.f32.mrb[0].mxu0
    %v313 = vadd.f32 %v186, %v312
    %v314 = vpop.f32.mrb[0].mxu0
    %v315 = vpop.f32.mrb[0].mxu0
    %316 = vdwg.mxu0
    %v317 = vmax.f32 %v270, 0.0
    %v318 = vmax.f32 %v272, 0.0
    %v319 = vmax.f32 %v311, 0.0
    %v320 = vmax.f32 %v313, 0.0
    %v321 = vpack.c.bf16 %v317, %v317
    %v322 = vpack.c.bf16 %v318, %v318
    %v323 = vpack.c.bf16 %v319, %v319
    %v324 = vpack.c.bf16 %v320, %v320
    %v325 = vld [vmem:[#allocation8] sm:$0xff]
    %v326 = vld [vmem:[#allocation8 + $0x8] sm:$0xff]
    %v327 = vld [vmem:[#allocation8 + $0x10] sm:$0xff]
    %v328 = vld [vmem:[#allocation8 + $0x18] sm:$0xff]
    %v329 = vld [vmem:[#allocation8 + $0x20] sm:$0xff]
    %v330 = vld [vmem:[#allocation8 + $0x28] sm:$0xff]
    %v331 = vld [vmem:[#allocation8 + $0x30] sm:$0xff]
    %v332 = vld [vmem:[#allocation8 + $0x38] sm:$0xff]
    %v333 = vld [vmem:[#allocation8 + $0x40] sm:$0xff]
    %v334 = vld [vmem:[#allocation8 + $0x48] sm:$0xff]
    %v335 = vld [vmem:[#allocation8 + $0x50] sm:$0xff]
    %v336 = vld [vmem:[#allocation8 + $0x58] sm:$0xff]
    %v337 = vld [vmem:[#allocation8 + $0x60] sm:$0xff]
    %v338 = vld [vmem:[#allocation8 + $0x68] sm:$0xff]
    %v339 = vld [vmem:[#allocation8 + $0x70] sm:$0xff]
    %v340 = vld [vmem:[#allocation8 + $0x78] sm:$0xff]
    %v341 = vld [vmem:[#allocation8 + $0x80] sm:$0xff]
    %v342 = vld [vmem:[#allocation8 + $0x88] sm:$0xff]
    %v343 = vld [vmem:[#allocation8 + $0x90] sm:$0xff]
    %v344 = vld [vmem:[#allocation8 + $0x98] sm:$0xff]
    %v345 = vld [vmem:[#allocation8 + $0xa0] sm:$0xff]
    %v346 = vld [vmem:[#allocation8 + $0xa8] sm:$0xff]
    %v347 = vld [vmem:[#allocation8 + $0xb0] sm:$0xff]
    %v348 = vld [vmem:[#allocation8 + $0xb8] sm:$0xff]
    %v349 = vld [vmem:[#allocation8 + $0xc0] sm:$0xff]
    %v350 = vld [vmem:[#allocation8 + $0xc8] sm:$0xff]
    %v351 = vld [vmem:[#allocation8 + $0xd0] sm:$0xff]
    %v352 = vld [vmem:[#allocation8 + $0xd8] sm:$0xff]
    %v353 = vld [vmem:[#allocation8 + $0xe0] sm:$0xff]
    %v354 = vld [vmem:[#allocation8 + $0xe8] sm:$0xff]
    %v355 = vld [vmem:[#allocation8 + $0xf0] sm:$0xff]
    %v356 = vld [vmem:[#allocation8 + $0xf8] sm:$0xff]
    %v357 = vld [vmem:[#allocation8 + $0x100] sm:$0xff]
    %v358 = vld [vmem:[#allocation8 + $0x108] sm:$0xff]
    %v359 = vld [vmem:[#allocation8 + $0x110] sm:$0xff]
    %v360 = vld [vmem:[#allocation8 + $0x118] sm:$0xff]
    %v361 = vld [vmem:[#allocation8 + $0x120] sm:$0xff]
    %v362 = vld [vmem:[#allocation8 + $0x128] sm:$0xff]
    %v363 = vld [vmem:[#allocation8 + $0x130] sm:$0xff]
    %v364 = vld [vmem:[#allocation8 + $0x138] sm:$0xff]
    %v365 = vld [vmem:[#allocation8 + $0x140] sm:$0xff]
    %v366 = vld [vmem:[#allocation8 + $0x148] sm:$0xff]
    %v367 = vld [vmem:[#allocation8 + $0x150] sm:$0xff]
    %v368 = vld [vmem:[#allocation8 + $0x158] sm:$0xff]
    %v369 = vld [vmem:[#allocation8 + $0x160] sm:$0xff]
    %v370 = vld [vmem:[#allocation8 + $0x168] sm:$0xff]
    %v371 = vld [vmem:[#allocation8 + $0x170] sm:$0xff]
    %v372 = vld [vmem:[#allocation8 + $0x178] sm:$0xff]
    %v373 = vld [vmem:[#allocation8 + $0x180] sm:$0xff]
    %v374 = vld [vmem:[#allocation8 + $0x188] sm:$0xff]
    %v375 = vld [vmem:[#allocation8 + $0x190] sm:$0xff]
    %v376 = vld [vmem:[#allocation8 + $0x198] sm:$0xff]
    %v377 = vld [vmem:[#allocation8 + $0x1a0] sm:$0xff]
    %v378 = vld [vmem:[#allocation8 + $0x1a8] sm:$0xff]
    %v379 = vld [vmem:[#allocation8 + $0x1b0] sm:$0xff]
    %v380 = vld [vmem:[#allocation8 + $0x1b8] sm:$0xff]
    %v381 = vld [vmem:[#allocation8 + $0x1c0] sm:$0xff]
    %v382 = vld [vmem:[#allocation8 + $0x1c8] sm:$0xff]
    %v383 = vld [vmem:[#allocation8 + $0x1d0] sm:$0xff]
    %v384 = vld [vmem:[#allocation8 + $0x1d8] sm:$0xff]
    %v385 = vld [vmem:[#allocation8 + $0x1e0] sm:$0xff]
    %v386 = vld [vmem:[#allocation8 + $0x1e8] sm:$0xff]
    %v387 = vld [vmem:[#allocation8 + $0x1f0] sm:$0xff]
    %v388 = vld [vmem:[#allocation8 + $0x1f8] sm:$0xff]
    %v389 = vld [vmem:[%s5] sm:$0x3]
    %v391 = vlaneseq
    %v392 = vshrl.u32 %v391, 7
    %v393 = vsub.s32 0, %v392
    %v394 = vrot.slane %v389, %v393
    %v395 = vlaneseq
    %v396 = vshrl.u32 %v395, 7
    %v397 = vsub.s32 1, %v396
    %v398 = vrot.slane %v389, %v397
    %v465 = vunpack.c.l.b16 %v325
    %v466 = vunpack.c.h.b16 %v325
    %v467 = vunpack.c.l.b16 %v326
    %v468 = vunpack.c.h.b16 %v326
    %v469 = vunpack.c.l.b16 %v327
    %v470 = vunpack.c.h.b16 %v327
    %v471 = vunpack.c.l.b16 %v328
    %v472 = vunpack.c.h.b16 %v328
    %v473 = vunpack.c.l.b16 %v329
    %v474 = vunpack.c.h.b16 %v329
    %v475 = vunpack.c.l.b16 %v330
    %v476 = vunpack.c.h.b16 %v330
    %v477 = vunpack.c.l.b16 %v331
    %v478 = vunpack.c.h.b16 %v331
    %v479 = vunpack.c.l.b16 %v332
    %v480 = vunpack.c.h.b16 %v332
    %v481 = vunpack.c.l.b16 %v333
    %v482 = vunpack.c.h.b16 %v333
    %v483 = vunpack.c.l.b16 %v334
    %v484 = vunpack.c.h.b16 %v334
    %v485 = vunpack.c.l.b16 %v335
    %v486 = vunpack.c.h.b16 %v335
    %v487 = vunpack.c.l.b16 %v336
    %v488 = vunpack.c.h.b16 %v336
    %v489 = vunpack.c.l.b16 %v337
    %v490 = vunpack.c.h.b16 %v337
    %v491 = vunpack.c.l.b16 %v338
    %v492 = vunpack.c.h.b16 %v338
    %v493 = vunpack.c.l.b16 %v339
    %v494 = vunpack.c.h.b16 %v339
    %v495 = vunpack.c.l.b16 %v340
    %v496 = vunpack.c.h.b16 %v340
    %v497 = vunpack.c.l.b16 %v341
    %v498 = vunpack.c.h.b16 %v341
    %v499 = vunpack.c.l.b16 %v342
    %v500 = vunpack.c.h.b16 %v342
    %v501 = vunpack.c.l.b16 %v343
    %v502 = vunpack.c.h.b16 %v343
    %v503 = vunpack.c.l.b16 %v344
    %v504 = vunpack.c.h.b16 %v344
    %v505 = vunpack.c.l.b16 %v345
    %v506 = vunpack.c.h.b16 %v345
    %v507 = vunpack.c.l.b16 %v346
    %v508 = vunpack.c.h.b16 %v346
    %v509 = vunpack.c.l.b16 %v347
    %v510 = vunpack.c.h.b16 %v347
    %v511 = vunpack.c.l.b16 %v348
    %v512 = vunpack.c.h.b16 %v348
    %v513 = vunpack.c.l.b16 %v349
    %v514 = vunpack.c.h.b16 %v349
    %v515 = vunpack.c.l.b16 %v350
    %v516 = vunpack.c.h.b16 %v350
    %v517 = vunpack.c.l.b16 %v351
    %v518 = vunpack.c.h.b16 %v351
    %v519 = vunpack.c.l.b16 %v352
    %v520 = vunpack.c.h.b16 %v352
    %v521 = vunpack.c.l.b16 %v353
    %v522 = vunpack.c.h.b16 %v353
    %v523 = vunpack.c.l.b16 %v354
    %v524 = vunpack.c.h.b16 %v354
    %v525 = vunpack.c.l.b16 %v355
    %v526 = vunpack.c.h.b16 %v355
    %v527 = vunpack.c.l.b16 %v356
    %v528 = vunpack.c.h.b16 %v356
    %v529 = vunpack.c.l.b16 %v357
    %v530 = vunpack.c.h.b16 %v357
    %v531 = vunpack.c.l.b16 %v358
    %v532 = vunpack.c.h.b16 %v358
    %v533 = vunpack.c.l.b16 %v359
    %v534 = vunpack.c.h.b16 %v359
    %v535 = vunpack.c.l.b16 %v360
    %v536 = vunpack.c.h.b16 %v360
    %v537 = vunpack.c.l.b16 %v361
    %v538 = vunpack.c.h.b16 %v361
    %v539 = vunpack.c.l.b16 %v362
    %v540 = vunpack.c.h.b16 %v362
    %v541 = vunpack.c.l.b16 %v363
    %v542 = vunpack.c.h.b16 %v363
    %v543 = vunpack.c.l.b16 %v364
    %v544 = vunpack.c.h.b16 %v364
    %v545 = vunpack.c.l.b16 %v365
    %v546 = vunpack.c.h.b16 %v365
    %v547 = vunpack.c.l.b16 %v366
    %v548 = vunpack.c.h.b16 %v366
    %v549 = vunpack.c.l.b16 %v367
    %v550 = vunpack.c.h.b16 %v367
    %v551 = vunpack.c.l.b16 %v368
    %v552 = vunpack.c.h.b16 %v368
    %v553 = vunpack.c.l.b16 %v369
    %v554 = vunpack.c.h.b16 %v369
    %v555 = vunpack.c.l.b16 %v370
    %v556 = vunpack.c.h.b16 %v370
    %v557 = vunpack.c.l.b16 %v371
    %v558 = vunpack.c.h.b16 %v371
    %v559 = vunpack.c.l.b16 %v372
    %v560 = vunpack.c.h.b16 %v372
    %v561 = vunpack.c.l.b16 %v373
    %v562 = vunpack.c.h.b16 %v373
    %v563 = vunpack.c.l.b16 %v374
    %v564 = vunpack.c.h.b16 %v374
    %v565 = vunpack.c.l.b16 %v375
    %v566 = vunpack.c.h.b16 %v375
    %v567 = vunpack.c.l.b16 %v376
    %v568 = vunpack.c.h.b16 %v376
    %v569 = vunpack.c.l.b16 %v377
    %v570 = vunpack.c.h.b16 %v377
    %v571 = vunpack.c.l.b16 %v378
    %v572 = vunpack.c.h.b16 %v378
    %v573 = vunpack.c.l.b16 %v379
    %v574 = vunpack.c.h.b16 %v379
    %v575 = vunpack.c.l.b16 %v380
    %v576 = vunpack.c.h.b16 %v380
    %v577 = vunpack.c.l.b16 %v381
    %v578 = vunpack.c.h.b16 %v381
    %v579 = vunpack.c.l.b16 %v382
    %v580 = vunpack.c.h.b16 %v382
    %v581 = vunpack.c.l.b16 %v383
    %v582 = vunpack.c.h.b16 %v383
    %v583 = vunpack.c.l.b16 %v384
    %v584 = vunpack.c.h.b16 %v384
    %v585 = vunpack.c.l.b16 %v385
    %v586 = vunpack.c.h.b16 %v385
    %v587 = vunpack.c.l.b16 %v386
    %v588 = vunpack.c.h.b16 %v386
    %v589 = vunpack.c.l.b16 %v387
    %v590 = vunpack.c.h.b16 %v387
    %v591 = vunpack.c.l.b16 %v388
    %v592 = vunpack.c.h.b16 %v388
    %v593 = vpack.c.b16 %v467, %v465
    %v594 = vpack.c.b16 %v468, %v466
    %v595 = vpack.c.b16 %v471, %v469
    %v596 = vpack.c.b16 %v472, %v470
    %v597 = vpack.c.b16 %v475, %v473
    %v598 = vpack.c.b16 %v476, %v474
    %v599 = vpack.c.b16 %v479, %v477
    %v600 = vpack.c.b16 %v480, %v478
    %v601 = vpack.c.b16 %v483, %v481
    %v602 = vpack.c.b16 %v484, %v482
    %v603 = vpack.c.b16 %v487, %v485
    %v604 = vpack.c.b16 %v488, %v486
    %v605 = vpack.c.b16 %v491, %v489
    %v606 = vpack.c.b16 %v492, %v490
    %v607 = vpack.c.b16 %v495, %v493
    %v608 = vpack.c.b16 %v496, %v494
    %v609 = vpack.c.b16 %v499, %v497
    %v610 = vpack.c.b16 %v500, %v498
    %v611 = vpack.c.b16 %v503, %v501
    %v612 = vpack.c.b16 %v504, %v502
    %v613 = vpack.c.b16 %v507, %v505
    %v614 = vpack.c.b16 %v508, %v506
    %v615 = vpack.c.b16 %v511, %v509
    %v616 = vpack.c.b16 %v512, %v510
    %v617 = vpack.c.b16 %v515, %v513
    %v618 = vpack.c.b16 %v516, %v514
    %v619 = vpack.c.b16 %v519, %v517
    %v620 = vpack.c.b16 %v520, %v518
    %v621 = vpack.c.b16 %v523, %v521
    %v622 = vpack.c.b16 %v524, %v522
    %v623 = vpack.c.b16 %v527, %v525
    %v624 = vpack.c.b16 %v528, %v526
    %v625 = vpack.c.b16 %v531, %v529
    %v626 = vpack.c.b16 %v532, %v530
    %v627 = vpack.c.b16 %v535, %v533
    %v628 = vpack.c.b16 %v536, %v534
    %v629 = vpack.c.b16 %v539, %v537
    %v630 = vpack.c.b16 %v540, %v538
    %v631 = vpack.c.b16 %v543, %v541
    %v632 = vpack.c.b16 %v544, %v542
    %v633 = vpack.c.b16 %v547, %v545
    %v634 = vpack.c.b16 %v548, %v546
    %v635 = vpack.c.b16 %v551, %v549
    %v636 = vpack.c.b16 %v552, %v550
    %v637 = vpack.c.b16 %v555, %v553
    %v638 = vpack.c.b16 %v556, %v554
    %v639 = vpack.c.b16 %v559, %v557
    %v640 = vpack.c.b16 %v560, %v558
    %v641 = vpack.c.b16 %v563, %v561
    %v642 = vpack.c.b16 %v564, %v562
    %v643 = vpack.c.b16 %v567, %v565
    %v644 = vpack.c.b16 %v568, %v566
    %v645 = vpack.c.b16 %v571, %v569
    %v646 = vpack.c.b16 %v572, %v570
    %v647 = vpack.c.b16 %v575, %v573
    %v648 = vpack.c.b16 %v576, %v574
    %v649 = vpack.c.b16 %v579, %v577
    %v650 = vpack.c.b16 %v580, %v578
    %v651 = vpack.c.b16 %v583, %v581
    %v652 = vpack.c.b16 %v584, %v582
    %v653 = vpack.c.b16 %v587, %v585
    %v654 = vpack.c.b16 %v588, %v586
    %v655 = vpack.c.b16 %v591, %v589
    %v656 = vpack.c.b16 %v592, %v590
    %721 = vmatprep.subr.bf16.mxu0 %v594
    %722 = vmatpush1.bf16.msra.mxu0 %v593
    %723 = vmatprep.subr.bf16.mxu0 %v596
    %724 = vmatpush1.bf16.msra.mxu0 %v595
    %725 = vmatprep.subr.bf16.mxu0 %v598
    %726 = vmatpush1.bf16.msra.mxu0 %v597
    %727 = vmatprep.subr.bf16.mxu0 %v600
    %728 = vmatpush1.bf16.msra.mxu0 %v599
    %729 = vmatprep.subr.bf16.mxu0 %v602
    %730 = vmatpush1.bf16.msra.mxu0 %v601
    %731 = vmatprep.subr.bf16.mxu0 %v604
    %732 = vmatpush1.bf16.msra.mxu0 %v603
    %733 = vmatprep.subr.bf16.mxu0 %v606
    %734 = vmatpush1.bf16.msra.mxu0 %v605
    %735 = vmatprep.subr.bf16.mxu0 %v608
    %736 = vmatpush1.bf16.msra.mxu0 %v607
    %737 = vmatprep.subr.bf16.mxu0 %v610
    %738 = vmatpush1.bf16.msra.mxu0 %v609
    %739 = vmatprep.subr.bf16.mxu0 %v612
    %740 = vmatpush1.bf16.msra.mxu0 %v611
    %741 = vmatprep.subr.bf16.mxu0 %v614
    %742 = vmatpush1.bf16.msra.mxu0 %v613
    %743 = vmatprep.subr.bf16.mxu0 %v616
    %744 = vmatpush1.bf16.msra.mxu0 %v615
    %745 = vmatprep.subr.bf16.mxu0 %v618
    %746 = vmatpush1.bf16.msra.mxu0 %v617
    %747 = vmatprep.subr.bf16.mxu0 %v620
    %748 = vmatpush1.bf16.msra.mxu0 %v619
    %749 = vmatprep.subr.bf16.mxu0 %v622
    %750 = vmatpush1.bf16.msra.mxu0 %v621
    %751 = vmatprep.subr.bf16.mxu0 %v624
    %752 = vmatpush1.bf16.msra.mxu0 %v623
    %753 = vmatprep.mubr.bf16.mxu0 %v322
    %754 = vmatmul.mubr.bf16.gmra.mrb[0].mxu0 %v321
    %v755 = vpop.f32.mrb[0].mxu0
    %v756 = vadd.f32 %v394, %v755
    %v757 = vpop.f32.mrb[0].mxu0
    %v758 = vadd.f32 %v398, %v757
    %v759 = vpop.f32.mrb[0].mxu0
    %v760 = vpop.f32.mrb[0].mxu0
    %761 = vdwg.mxu0
    %762 = vmatprep.subr.bf16.mxu0 %v626
    %763 = vmatpush1.bf16.msra.mxu0 %v625
    %764 = vmatprep.subr.bf16.mxu0 %v628
    %765 = vmatpush1.bf16.msra.mxu0 %v627
    %766 = vmatprep.subr.bf16.mxu0 %v630
    %767 = vmatpush1.bf16.msra.mxu0 %v629
    %768 = vmatprep.subr.bf16.mxu0 %v632
    %769 = vmatpush1.bf16.msra.mxu0 %v631
    %770 = vmatprep.subr.bf16.mxu0 %v634
    %771 = vmatpush1.bf16.msra.mxu0 %v633
    %772 = vmatprep.subr.bf16.mxu0 %v636
    %773 = vmatpush1.bf16.msra.mxu0 %v635
    %774 = vmatprep.subr.bf16.mxu0 %v638
    %775 = vmatpush1.bf16.msra.mxu0 %v637
    %776 = vmatprep.subr.bf16.mxu0 %v640
    %777 = vmatpush1.bf16.msra.mxu0 %v639
    %778 = vmatprep.subr.bf16.mxu0 %v642
    %779 = vmatpush1.bf16.msra.mxu0 %v641
    %780 = vmatprep.subr.bf16.mxu0 %v644
    %781 = vmatpush1.bf16.msra.mxu0 %v643
    %782 = vmatprep.subr.bf16.mxu0 %v646
    %783 = vmatpush1.bf16.msra.mxu0 %v645
    %784 = vmatprep.subr.bf16.mxu0 %v648
    %785 = vmatpush1.bf16.msra.mxu0 %v647
    %786 = vmatprep.subr.bf16.mxu0 %v650
    %787 = vmatpush1.bf16.msra.mxu0 %v649
    %788 = vmatprep.subr.bf16.mxu0 %v652
    %789 = vmatpush1.bf16.msra.mxu0 %v651
    %790 = vmatprep.subr.bf16.mxu0 %v654
    %791 = vmatpush1.bf16.msra.mxu0 %v653
    %792 = vmatprep.subr.bf16.mxu0 %v656
    %793 = vmatpush1.bf16.msra.mxu0 %v655
    %794 = vmatprep.mubr.bf16.mxu0 %v324
    %795 = vmatmul.mubr.bf16.gmra.mrb[0].mxu0 %v323
    %v796 = vpop.f32.mrb[0].mxu0
    %v797 = vadd.f32 %v756, %v796
    %v798 = vpop.f32.mrb[0].mxu0
    %v799 = vadd.f32 %v758, %v798
    %v800 = vpop.f32.mrb[0].mxu0
    %v801 = vpop.f32.mrb[0].mxu0
    %802 = vdwg.mxu0
    %v803 = vmax.f32 %v797, 0.0
    %v804 = vmax.f32 %v799, 0.0
    %v805 = vpack.c.bf16 %v803, %v803
    %v806 = vpack.c.bf16 %v804, %v804
    %v807 = vld [vmem:[%s6] sm:$0xf]
    %v808 = vld [vmem:[%s7] sm:$0x1]
    %v810 = vlaneseq
    %v811 = vshrl.u32 %v810, 7
    %v812 = vsub.s32 0, %v811
    %v813 = vrot.slane %v808, %v812
    %vm815 = vcmask 64512
    %v817 = vsel %vm815, %v160, 0
    %vm819 = vcmask 1043456
    %v821 = vsel %vm819, %v807, 0
    %823 = vmatprep.subr.bf16.mxu0 0
    %824 = vmatpush1.bf16.msra.mxu0 %v821
    %825 = vmatprep.subr.bf16.mxu0 0
    %826 = vmatpush1.bf16.msra.mxu0 0
    %827 = vmatprep.subr.bf16.mxu0 0
    %828 = vmatpush1.bf16.msra.mxu0 0
    %829 = vmatprep.subr.bf16.mxu0 0
    %830 = vmatpush1.bf16.msra.mxu0 0
    %831 = vmatprep.subr.bf16.mxu0 0
    %832 = vmatpush1.bf16.msra.mxu0 0
    %833 = vmatprep.subr.bf16.mxu0 0
    %834 = vmatpush1.bf16.msra.mxu0 0
    %835 = vmatprep.subr.bf16.mxu0 0
    %836 = vmatpush1.bf16.msra.mxu0 0
    %837 = vmatprep.subr.bf16.mxu0 0
    %838 = vmatpush1.bf16.msra.mxu0 0
    %839 = vmatprep.subr.bf16.mxu0 0
    %840 = vmatpush1.bf16.msra.mxu0 0
    %841 = vmatprep.subr.bf16.mxu0 0
    %842 = vmatpush1.bf16.msra.mxu0 0
    %843 = vmatprep.subr.bf16.mxu0 0
    %844 = vmatpush1.bf16.msra.mxu0 0
    %845 = vmatprep.subr.bf16.mxu0 0
    %846 = vmatpush1.bf16.msra.mxu0 0
    %847 = vmatprep.subr.bf16.mxu0 0
    %848 = vmatpush1.bf16.msra.mxu0 0
    %849 = vmatprep.subr.bf16.mxu0 0
    %850 = vmatpush1.bf16.msra.mxu0 0
    %851 = vmatprep.subr.bf16.mxu0 0
    %852 = vmatpush1.bf16.msra.mxu0 0
    %853 = vmatprep.subr.bf16.mxu0 0
    %854 = vmatpush1.bf16.msra.mxu0 0
    %855 = vmatprep.mubr.bf16.mxu0 0
    %856 = vmatmul.mubr.bf16.gmra.mrb[0].mxu0 %v817
    %v857 = vpop.f32.mrb[0].mxu0
    %v858 = vadd.f32 %v813, %v857
    %v859 = vpop.f32.mrb[0].mxu0
    %v860 = vpop.f32.mrb[0].mxu0
    %v861 = vpop.f32.mrb[0].mxu0
    %862 = vdwg.mxu0
    %v863 = vmax.f32 %v858, 0.0
    %v864 = vpack.c.bf16 %v863, %v863
    %v865 = vld [vmem:[#allocation10] sm:$0xf]
    %v866 = vld [vmem:[#allocation10 + $0x4] sm:$0xf]
    %v867 = vld [vmem:[#allocation10 + $0x8] sm:$0xf]
    %v868 = vld [vmem:[#allocation10 + $0xc] sm:$0xf]
    %v869 = vld [vmem:[#allocation10 + $0x10] sm:$0xf]
    %v870 = vld [vmem:[#allocation10 + $0x14] sm:$0xf]
    %v871 = vld [vmem:[#allocation10 + $0x18] sm:$0xf]
    %v872 = vld [vmem:[#allocation10 + $0x1c] sm:$0xf]
    %v873 = vld [vmem:[#allocation10 + $0x20] sm:$0xf]
    %v874 = vld [vmem:[#allocation10 + $0x24] sm:$0xf]
    %v875 = vld [vmem:[#allocation10 + $0x28] sm:$0xf]
    %v876 = vld [vmem:[#allocation10 + $0x2c] sm:$0xf]
    %v877 = vld [vmem:[#allocation10 + $0x30] sm:$0xf]
    %v878 = vld [vmem:[#allocation10 + $0x34] sm:$0xf]
    %v879 = vld [vmem:[#allocation10 + $0x38] sm:$0xf]
    %v880 = vld [vmem:[#allocation10 + $0x3c] sm:$0xf]
    %v881 = vld [vmem:[%s9] sm:$0x1]
    %v883 = vlaneseq
    %v884 = vshrl.u32 %v883, 7
    %v885 = vsub.s32 0, %v884
    %v886 = vrot.slane %v881, %v885
    %v904 = vunpack.c.l.b16 %v865
    %v905 = vunpack.c.l.b16 %v866
    %v906 = vunpack.c.l.b16 %v867
    %v907 = vunpack.c.l.b16 %v868
    %v908 = vunpack.c.l.b16 %v869
    %v909 = vunpack.c.l.b16 %v870
    %v910 = vunpack.c.l.b16 %v871
    %v911 = vunpack.c.l.b16 %v872
    %v912 = vunpack.c.l.b16 %v873
    %v913 = vunpack.c.l.b16 %v874
    %v914 = vunpack.c.l.b16 %v875
    %v915 = vunpack.c.l.b16 %v876
    %v916 = vunpack.c.l.b16 %v877
    %v917 = vunpack.c.l.b16 %v878
    %v918 = vunpack.c.l.b16 %v879
    %v919 = vunpack.c.l.b16 %v880
    %v920 = vpack.c.b16 %v905, %v904
    %v921 = vpack.c.b16 %v907, %v906
    %v922 = vpack.c.b16 %v909, %v908
    %v923 = vpack.c.b16 %v911, %v910
    %v924 = vpack.c.b16 %v913, %v912
    %v925 = vpack.c.b16 %v915, %v914
    %v926 = vpack.c.b16 %v917, %v916
    %v927 = vpack.c.b16 %v919, %v918
    %936 = vmatprep.subr.bf16.mxu0 0
    %937 = vmatpush1.bf16.msra.mxu0 %v920
    %938 = vmatprep.subr.bf16.mxu0 0
    %939 = vmatpush1.bf16.msra.mxu0 %v921
    %940 = vmatprep.subr.bf16.mxu0 0
    %941 = vmatpush1.bf16.msra.mxu0 %v922
    %942 = vmatprep.subr.bf16.mxu0 0
    %943 = vmatpush1.bf16.msra.mxu0 %v923
    %944 = vmatprep.subr.bf16.mxu0 0
    %945 = vmatpush1.bf16.msra.mxu0 %v924
    %946 = vmatprep.subr.bf16.mxu0 0
    %947 = vmatpush1.bf16.msra.mxu0 %v925
    %948 = vmatprep.subr.bf16.mxu0 0
    %949 = vmatpush1.bf16.msra.mxu0 %v926
    %950 = vmatprep.subr.bf16.mxu0 0
    %951 = vmatpush1.bf16.msra.mxu0 %v927
    %952 = vmatprep.subr.bf16.mxu0 0
    %953 = vmatpush1.bf16.msra.mxu0 0
    %954 = vmatprep.subr.bf16.mxu0 0
    %955 = vmatpush1.bf16.msra.mxu0 0
    %956 = vmatprep.subr.bf16.mxu0 0
    %957 = vmatpush1.bf16.msra.mxu0 0
    %958 = vmatprep.subr.bf16.mxu0 0
    %959 = vmatpush1.bf16.msra.mxu0 0
    %960 = vmatprep.subr.bf16.mxu0 0
    %961 = vmatpush1.bf16.msra.mxu0 0
    %962 = vmatprep.subr.bf16.mxu0 0
    %963 = vmatpush1.bf16.msra.mxu0 0
    %964 = vmatprep.subr.bf16.mxu0 0
    %965 = vmatpush1.bf16.msra.mxu0 0
    %966 = vmatprep.subr.bf16.mxu0 0
    %967 = vmatpush1.bf16.msra.mxu0 0
    %968 = vmatprep.mubr.bf16.mxu0 0
    %969 = vmatmul.mubr.bf16.gmra.mrb[0].mxu0 %v864
    %v970 = vpop.f32.mrb[0].mxu0
    %v971 = vadd.f32 %v886, %v970
    %v972 = vpop.f32.mrb[0].mxu0
    %v973 = vpop.f32.mrb[0].mxu0
    %v974 = vpop.f32.mrb[0].mxu0
    %975 = vdwg.mxu0
    %v976 = vmax.f32 %v971, 0.0
    %v977 = vpack.c.bf16 %v976, %v976
    %v978 = vld [vmem:[#allocation11] sm:$0xff]
    %v979 = vld [vmem:[#allocation11 + $0x8] sm:$0xff]
    %v980 = vld [vmem:[#allocation11 + $0x10] sm:$0xff]
    %v981 = vld [vmem:[#allocation11 + $0x18] sm:$0xff]
    %v982 = vld [vmem:[#allocation11 + $0x20] sm:$0xff]
    %v983 = vld [vmem:[#allocation11 + $0x28] sm:$0xff]
    %v984 = vld [vmem:[#allocation11 + $0x30] sm:$0xff]
    %v985 = vld [vmem:[#allocation11 + $0x38] sm:$0xff]
    %v986 = vld [vmem:[#allocation11 + $0x40] sm:$0xff]
    %v987 = vld [vmem:[#allocation11 + $0x48] sm:$0xff]
    %v988 = vld [vmem:[#allocation11 + $0x50] sm:$0xff]
    %v989 = vld [vmem:[#allocation11 + $0x58] sm:$0xff]
    %v990 = vld [vmem:[#allocation11 + $0x60] sm:$0xff]
    %v991 = vld [vmem:[#allocation11 + $0x68] sm:$0xff]
    %v992 = vld [vmem:[#allocation11 + $0x70] sm:$0xff]
    %v993 = vld [vmem:[#allocation11 + $0x78] sm:$0xff]
    %v994 = vld [vmem:[#allocation11 + $0x80] sm:$0xff]
    %v995 = vld [vmem:[#allocation11 + $0x88] sm:$0xff]
    %v996 = vld [vmem:[#allocation11 + $0x90] sm:$0xff]
    %v997 = vld [vmem:[#allocation11 + $0x98] sm:$0xff]
    %v998 = vld [vmem:[#allocation11 + $0xa0] sm:$0xff]
    %v999 = vld [vmem:[#allocation11 + $0xa8] sm:$0xff]
    %v1000 = vld [vmem:[#allocation11 + $0xb0] sm:$0xff]
    %v1001 = vld [vmem:[#allocation11 + $0xb8] sm:$0xff]
    %v1002 = vld [vmem:[#allocation11 + $0xc0] sm:$0xff]
    %v1003 = vld [vmem:[#allocation11 + $0xc8] sm:$0xff]
    %v1004 = vld [vmem:[#allocation11 + $0xd0] sm:$0xff]
    %v1005 = vld [vmem:[#allocation11 + $0xd8] sm:$0xff]
    %v1006 = vld [vmem:[#allocation11 + $0xe0] sm:$0xff]
    %v1007 = vld [vmem:[#allocation11 + $0xe8] sm:$0xff]
    %v1008 = vld [vmem:[#allocation11 + $0xf0] sm:$0xff]
    %v1009 = vld [vmem:[#allocation11 + $0xf8] sm:$0xff]
    %v1010 = vld [vmem:[#allocation13] sm:$0xff]
    %v1011 = vld [vmem:[#allocation13 + $0x8] sm:$0xff]
    %v1012 = vld [vmem:[#allocation13 + $0x10] sm:$0xff]
    %v1013 = vld [vmem:[#allocation13 + $0x18] sm:$0xff]
    %v1014 = vld [vmem:[#allocation13 + $0x20] sm:$0xff]
    %v1015 = vld [vmem:[#allocation13 + $0x28] sm:$0xff]
    %v1016 = vld [vmem:[#allocation13 + $0x30] sm:$0xff]
    %v1017 = vld [vmem:[#allocation13 + $0x38] sm:$0xff]
    %v1018 = vld [vmem:[#allocation13 + $0x40] sm:$0xff]
    %v1019 = vld [vmem:[#allocation13 + $0x48] sm:$0xff]
    %v1020 = vld [vmem:[#allocation13 + $0x50] sm:$0xff]
    %v1021 = vld [vmem:[#allocation13 + $0x58] sm:$0xff]
    %v1022 = vld [vmem:[#allocation13 + $0x60] sm:$0xff]
    %v1023 = vld [vmem:[#allocation13 + $0x68] sm:$0xff]
    %v1024 = vld [vmem:[#allocation13 + $0x70] sm:$0xff]
    %v1025 = vld [vmem:[#allocation13 + $0x78] sm:$0xff]
    %v1042 = vunpack.c.l.b16 %v1010
    %v1043 = vunpack.c.h.b16 %v1010
    %v1044 = vunpack.c.l.b16 %v1011
    %v1045 = vunpack.c.h.b16 %v1011
    %v1046 = vunpack.c.l.b16 %v1012
    %v1047 = vunpack.c.h.b16 %v1012
    %v1048 = vunpack.c.l.b16 %v1013
    %v1049 = vunpack.c.h.b16 %v1013
    %v1050 = vunpack.c.l.b16 %v1014
    %v1051 = vunpack.c.h.b16 %v1014
    %v1052 = vunpack.c.l.b16 %v1015
    %v1053 = vunpack.c.h.b16 %v1015
    %v1054 = vunpack.c.l.b16 %v1016
    %v1055 = vunpack.c.h.b16 %v1016
    %v1056 = vunpack.c.l.b16 %v1017
    %v1057 = vunpack.c.h.b16 %v1017
    %v1058 = vunpack.c.l.b16 %v1018
    %v1059 = vunpack.c.h.b16 %v1018
    %v1060 = vunpack.c.l.b16 %v1019
    %v1061 = vunpack.c.h.b16 %v1019
    %v1062 = vunpack.c.l.b16 %v1020
    %v1063 = vunpack.c.h.b16 %v1020
    %v1064 = vunpack.c.l.b16 %v1021
    %v1065 = vunpack.c.h.b16 %v1021
    %v1066 = vunpack.c.l.b16 %v1022
    %v1067 = vunpack.c.h.b16 %v1022
    %v1068 = vunpack.c.l.b16 %v1023
    %v1069 = vunpack.c.h.b16 %v1023
    %v1070 = vunpack.c.l.b16 %v1024
    %v1071 = vunpack.c.h.b16 %v1024
    %v1072 = vunpack.c.l.b16 %v1025
    %v1073 = vunpack.c.h.b16 %v1025
    %v1074 = vpack.c.b16 %v1044, %v1042
    %v1075 = vpack.c.b16 %v1045, %v1043
    %v1076 = vpack.c.b16 %v1048, %v1046
    %v1077 = vpack.c.b16 %v1049, %v1047
    %v1078 = vpack.c.b16 %v1052, %v1050
    %v1079 = vpack.c.b16 %v1053, %v1051
    %v1080 = vpack.c.b16 %v1056, %v1054
    %v1081 = vpack.c.b16 %v1057, %v1055
    %v1082 = vpack.c.b16 %v1060, %v1058
    %v1083 = vpack.c.b16 %v1061, %v1059
    %v1084 = vpack.c.b16 %v1064, %v1062
    %v1085 = vpack.c.b16 %v1065, %v1063
    %v1086 = vpack.c.b16 %v1068, %v1066
    %v1087 = vpack.c.b16 %v1069, %v1067
    %v1088 = vpack.c.b16 %v1072, %v1070
    %v1089 = vpack.c.b16 %v1073, %v1071
    %1106 = vmatprep.subr.bf16.mxu0 %v1075
    %1107 = vmatpush1.bf16.msra.mxu0 %v1074
    %1108 = vmatprep.subr.bf16.mxu0 %v1077
    %1109 = vmatpush1.bf16.msra.mxu0 %v1076
    %1110 = vmatprep.subr.bf16.mxu0 %v1079
    %1111 = vmatpush1.bf16.msra.mxu0 %v1078
    %1112 = vmatprep.subr.bf16.mxu0 %v1081
    %1113 = vmatpush1.bf16.msra.mxu0 %v1080
    %1114 = vmatprep.subr.bf16.mxu0 %v1083
    %1115 = vmatpush1.bf16.msra.mxu0 %v1082
    %1116 = vmatprep.subr.bf16.mxu0 %v1085
    %1117 = vmatpush1.bf16.msra.mxu0 %v1084
    %1118 = vmatprep.subr.bf16.mxu0 %v1087
    %1119 = vmatpush1.bf16.msra.mxu0 %v1086
    %1120 = vmatprep.subr.bf16.mxu0 %v1089
    %1121 = vmatpush1.bf16.msra.mxu0 %v1088
    %1122 = vmatprep.subr.bf16.mxu0 0
    %1123 = vmatpush1.bf16.msra.mxu0 0
    %1124 = vmatprep.subr.bf16.mxu0 0
    %1125 = vmatpush1.bf16.msra.mxu0 0
    %1126 = vmatprep.subr.bf16.mxu0 0
    %1127 = vmatpush1.bf16.msra.mxu0 0
    %1128 = vmatprep.subr.bf16.mxu0 0
    %1129 = vmatpush1.bf16.msra.mxu0 0
    %1130 = vmatprep.subr.bf16.mxu0 0
    %1131 = vmatpush1.bf16.msra.mxu0 0
    %1132 = vmatprep.subr.bf16.mxu0 0
    %1133 = vmatpush1.bf16.msra.mxu0 0
    %1134 = vmatprep.subr.bf16.mxu0 0
    %1135 = vmatpush1.bf16.msra.mxu0 0
    %1136 = vmatprep.subr.bf16.mxu0 0
    %1137 = vmatpush1.bf16.msra.mxu0 0
    %1138 = vmatprep.mubr.bf16.mxu0 0
    %1139 = vmatmul.mubr.bf16.gmra.mrb[0].mxu0 %v977
    %v1140 = vpop.f32.mrb[0].mxu0
    %v1141 = vadd.f32 0.0, %v1140
    %v1142 = vpop.f32.mrb[0].mxu0
    %v1143 = vadd.f32 0.0, %v1142
    %v1144 = vpop.f32.mrb[0].mxu0
    %v1145 = vpop.f32.mrb[0].mxu0
    %1146 = vdwg.mxu0
    %v1179 = vunpack.c.l.b16 %v978
    %v1180 = vunpack.c.h.b16 %v978
    %v1181 = vunpack.c.l.b16 %v979
    %v1182 = vunpack.c.h.b16 %v979
    %v1183 = vunpack.c.l.b16 %v980
    %v1184 = vunpack.c.h.b16 %v980
    %v1185 = vunpack.c.l.b16 %v981
    %v1186 = vunpack.c.h.b16 %v981
    %v1187 = vunpack.c.l.b16 %v982
    %v1188 = vunpack.c.h.b16 %v982
    %v1189 = vunpack.c.l.b16 %v983
    %v1190 = vunpack.c.h.b16 %v983
    %v1191 = vunpack.c.l.b16 %v984
    %v1192 = vunpack.c.h.b16 %v984
    %v1193 = vunpack.c.l.b16 %v985
    %v1194 = vunpack.c.h.b16 %v985
    %v1195 = vunpack.c.l.b16 %v986
    %v1196 = vunpack.c.h.b16 %v986
    %v1197 = vunpack.c.l.b16 %v987
    %v1198 = vunpack.c.h.b16 %v987
    %v1199 = vunpack.c.l.b16 %v988
    %v1200 = vunpack.c.h.b16 %v988
    %v1201 = vunpack.c.l.b16 %v989
    %v1202 = vunpack.c.h.b16 %v989
    %v1203 = vunpack.c.l.b16 %v990
    %v1204 = vunpack.c.h.b16 %v990
    %v1205 = vunpack.c.l.b16 %v991
    %v1206 = vunpack.c.h.b16 %v991
    %v1207 = vunpack.c.l.b16 %v992
    %v1208 = vunpack.c.h.b16 %v992
    %v1209 = vunpack.c.l.b16 %v993
    %v1210 = vunpack.c.h.b16 %v993
    %v1211 = vunpack.c.l.b16 %v994
    %v1212 = vunpack.c.h.b16 %v994
    %v1213 = vunpack.c.l.b16 %v995
    %v1214 = vunpack.c.h.b16 %v995
    %v1215 = vunpack.c.l.b16 %v996
    %v1216 = vunpack.c.h.b16 %v996
    %v1217 = vunpack.c.l.b16 %v997
    %v1218 = vunpack.c.h.b16 %v997
    %v1219 = vunpack.c.l.b16 %v998
    %v1220 = vunpack.c.h.b16 %v998
    %v1221 = vunpack.c.l.b16 %v999
    %v1222 = vunpack.c.h.b16 %v999
    %v1223 = vunpack.c.l.b16 %v1000
    %v1224 = vunpack.c.h.b16 %v1000
    %v1225 = vunpack.c.l.b16 %v1001
    %v1226 = vunpack.c.h.b16 %v1001
    %v1227 = vunpack.c.l.b16 %v1002
    %v1228 = vunpack.c.h.b16 %v1002
    %v1229 = vunpack.c.l.b16 %v1003
    %v1230 = vunpack.c.h.b16 %v1003
    %v1231 = vunpack.c.l.b16 %v1004
    %v1232 = vunpack.c.h.b16 %v1004
    %v1233 = vunpack.c.l.b16 %v1005
    %v1234 = vunpack.c.h.b16 %v1005
    %v1235 = vunpack.c.l.b16 %v1006
    %v1236 = vunpack.c.h.b16 %v1006
    %v1237 = vunpack.c.l.b16 %v1007
    %v1238 = vunpack.c.h.b16 %v1007
    %v1239 = vunpack.c.l.b16 %v1008
    %v1240 = vunpack.c.h.b16 %v1008
    %v1241 = vunpack.c.l.b16 %v1009
    %v1242 = vunpack.c.h.b16 %v1009
    %v1243 = vpack.c.b16 %v1181, %v1179
    %v1244 = vpack.c.b16 %v1182, %v1180
    %v1245 = vpack.c.b16 %v1185, %v1183
    %v1246 = vpack.c.b16 %v1186, %v1184
    %v1247 = vpack.c.b16 %v1189, %v1187
    %v1248 = vpack.c.b16 %v1190, %v1188
    %v1249 = vpack.c.b16 %v1193, %v1191
    %v1250 = vpack.c.b16 %v1194, %v1192
    %v1251 = vpack.c.b16 %v1197, %v1195
    %v1252 = vpack.c.b16 %v1198, %v1196
    %v1253 = vpack.c.b16 %v1201, %v1199
    %v1254 = vpack.c.b16 %v1202, %v1200
    %v1255 = vpack.c.b16 %v1205, %v1203
    %v1256 = vpack.c.b16 %v1206, %v1204
    %v1257 = vpack.c.b16 %v1209, %v1207
    %v1258 = vpack.c.b16 %v1210, %v1208
    %v1259 = vpack.c.b16 %v1213, %v1211
    %v1260 = vpack.c.b16 %v1214, %v1212
    %v1261 = vpack.c.b16 %v1217, %v1215
    %v1262 = vpack.c.b16 %v1218, %v1216
    %v1263 = vpack.c.b16 %v1221, %v1219
    %v1264 = vpack.c.b16 %v1222, %v1220
    %v1265 = vpack.c.b16 %v1225, %v1223
    %v1266 = vpack.c.b16 %v1226, %v1224
    %v1267 = vpack.c.b16 %v1229, %v1227
    %v1268 = vpack.c.b16 %v1230, %v1228
    %v1269 = vpack.c.b16 %v1233, %v1231
    %v1270 = vpack.c.b16 %v1234, %v1232
    %v1271 = vpack.c.b16 %v1237, %v1235
    %v1272 = vpack.c.b16 %v1238, %v1236
    %v1273 = vpack.c.b16 %v1241, %v1239
    %v1274 = vpack.c.b16 %v1242, %v1240
    %1307 = vmatprep.subr.bf16.mxu0 %v1244
    %1308 = vmatpush1.bf16.msra.mxu0 %v1243
    %1309 = vmatprep.subr.bf16.mxu0 %v1246
    %1310 = vmatpush1.bf16.msra.mxu0 %v1245
    %1311 = vmatprep.subr.bf16.mxu0 %v1248
    %1312 = vmatpush1.bf16.msra.mxu0 %v1247
    %1313 = vmatprep.subr.bf16.mxu0 %v1250
    %1314 = vmatpush1.bf16.msra.mxu0 %v1249
    %1315 = vmatprep.subr.bf16.mxu0 %v1252
    %1316 = vmatpush1.bf16.msra.mxu0 %v1251
    %1317 = vmatprep.subr.bf16.mxu0 %v1254
    %1318 = vmatpush1.bf16.msra.mxu0 %v1253
    %1319 = vmatprep.subr.bf16.mxu0 %v1256
    %1320 = vmatpush1.bf16.msra.mxu0 %v1255
    %1321 = vmatprep.subr.bf16.mxu0 %v1258
    %1322 = vmatpush1.bf16.msra.mxu0 %v1257
    %1323 = vmatprep.subr.bf16.mxu0 %v1260
    %1324 = vmatpush1.bf16.msra.mxu0 %v1259
    %1325 = vmatprep.subr.bf16.mxu0 %v1262
    %1326 = vmatpush1.bf16.msra.mxu0 %v1261
    %1327 = vmatprep.subr.bf16.mxu0 %v1264
    %1328 = vmatpush1.bf16.msra.mxu0 %v1263
    %1329 = vmatprep.subr.bf16.mxu0 %v1266
    %1330 = vmatpush1.bf16.msra.mxu0 %v1265
    %1331 = vmatprep.subr.bf16.mxu0 %v1268
    %1332 = vmatpush1.bf16.msra.mxu0 %v1267
    %1333 = vmatprep.subr.bf16.mxu0 %v1270
    %1334 = vmatpush1.bf16.msra.mxu0 %v1269
    %1335 = vmatprep.subr.bf16.mxu0 %v1272
    %1336 = vmatpush1.bf16.msra.mxu0 %v1271
    %1337 = vmatprep.subr.bf16.mxu0 %v1274
    %1338 = vmatpush1.bf16.msra.mxu0 %v1273
    %1339 = vmatprep.mubr.bf16.mxu0 %v806
    %1340 = vmatmul.mubr.bf16.gmra.mrb[0].mxu0 %v805
    %v1341 = vpop.f32.mrb[0].mxu0
    %v1342 = vadd.f32 %v1141, %v1341
    %v1343 = vpop.f32.mrb[0].mxu0
    %v1344 = vadd.f32 %v1143, %v1343
    %v1345 = vpop.f32.mrb[0].mxu0
    %v1346 = vpop.f32.mrb[0].mxu0
    %1347 = vdwg.mxu0
    %v1348 = vld [vmem:[%s12] sm:$0x3]
    %v1350 = vlaneseq
    %v1351 = vshrl.u32 %v1350, 7
    %v1352 = vsub.s32 0, %v1351
    %v1353 = vrot.slane %v1348, %v1352
    %v1354 = vlaneseq
    %v1355 = vshrl.u32 %v1354, 7
    %v1356 = vsub.s32 1, %v1355
    %v1357 = vrot.slane %v1348, %v1356
    %v1360 = vadd.f32 %v1342, %v1353
    %v1361 = vadd.f32 %v1344, %v1357
    %v1362 = vmax.f32 %v1360, 0.0
    %v1363 = vmax.f32 %v1361, 0.0
    %v1364 = vpack.c.bf16 %v1362, %v1362
    %v1365 = vpack.c.bf16 %v1363, %v1363
    %v1366 = vld [vmem:[#allocation14] sm:$0xf]
    %v1367 = vld [vmem:[#allocation14 + $0x4] sm:$0xf]
    %v1368 = vld [vmem:[#allocation14 + $0x8] sm:$0xf]
    %v1369 = vld [vmem:[#allocation14 + $0xc] sm:$0xf]
    %v1370 = vld [vmem:[#allocation14 + $0x10] sm:$0xf]
    %v1371 = vld [vmem:[#allocation14 + $0x14] sm:$0xf]
    %v1372 = vld [vmem:[#allocation14 + $0x18] sm:$0xf]
    %v1373 = vld [vmem:[#allocation14 + $0x1c] sm:$0xf]
    %v1374 = vld [vmem:[#allocation14 + $0x20] sm:$0xf]
    %v1375 = vld [vmem:[#allocation14 + $0x24] sm:$0xf]
    %v1376 = vld [vmem:[#allocation14 + $0x28] sm:$0xf]
    %v1377 = vld [vmem:[#allocation14 + $0x2c] sm:$0xf]
    %v1378 = vld [vmem:[#allocation14 + $0x30] sm:$0xf]
    %v1379 = vld [vmem:[#allocation14 + $0x34] sm:$0xf]
    %v1380 = vld [vmem:[#allocation14 + $0x38] sm:$0xf]
    %v1381 = vld [vmem:[#allocation14 + $0x3c] sm:$0xf]
    %v1382 = vld [vmem:[#allocation14 + $0x40] sm:$0xf]
    %v1383 = vld [vmem:[#allocation14 + $0x44] sm:$0xf]
    %v1384 = vld [vmem:[#allocation14 + $0x48] sm:$0xf]
    %v1385 = vld [vmem:[#allocation14 + $0x4c] sm:$0xf]
    %v1386 = vld [vmem:[#allocation14 + $0x50] sm:$0xf]
    %v1387 = vld [vmem:[#allocation14 + $0x54] sm:$0xf]
    %v1388 = vld [vmem:[#allocation14 + $0x58] sm:$0xf]
    %v1389 = vld [vmem:[#allocation14 + $0x5c] sm:$0xf]
    %v1390 = vld [vmem:[#allocation14 + $0x60] sm:$0xf]
    %v1391 = vld [vmem:[#allocation14 + $0x64] sm:$0xf]
    %v1392 = vld [vmem:[#allocation14 + $0x68] sm:$0xf]
    %v1393 = vld [vmem:[#allocation14 + $0x6c] sm:$0xf]
    %v1394 = vld [vmem:[#allocation14 + $0x70] sm:$0xf]
    %v1395 = vld [vmem:[#allocation14 + $0x74] sm:$0xf]
    %v1396 = vld [vmem:[#allocation14 + $0x78] sm:$0xf]
    %v1397 = vld [vmem:[#allocation14 + $0x7c] sm:$0xf]
    %v1398 = vld [vmem:[%s14] sm:$0x1]
    %v1400 = vlaneseq
    %v1401 = vshrl.u32 %v1400, 7
    %v1402 = vsub.s32 0, %v1401
    %v1403 = vrot.slane %v1398, %v1402
    %v1437 = vunpack.c.l.b16 %v1366
    %v1438 = vunpack.c.l.b16 %v1367
    %v1439 = vunpack.c.l.b16 %v1368
    %v1440 = vunpack.c.l.b16 %v1369
    %v1441 = vunpack.c.l.b16 %v1370
    %v1442 = vunpack.c.l.b16 %v1371
    %v1443 = vunpack.c.l.b16 %v1372
    %v1444 = vunpack.c.l.b16 %v1373
    %v1445 = vunpack.c.l.b16 %v1374
    %v1446 = vunpack.c.l.b16 %v1375
    %v1447 = vunpack.c.l.b16 %v1376
    %v1448 = vunpack.c.l.b16 %v1377
    %v1449 = vunpack.c.l.b16 %v1378
    %v1450 = vunpack.c.l.b16 %v1379
    %v1451 = vunpack.c.l.b16 %v1380
    %v1452 = vunpack.c.l.b16 %v1381
    %v1453 = vunpack.c.l.b16 %v1382
    %v1454 = vunpack.c.l.b16 %v1383
    %v1455 = vunpack.c.l.b16 %v1384
    %v1456 = vunpack.c.l.b16 %v1385
    %v1457 = vunpack.c.l.b16 %v1386
    %v1458 = vunpack.c.l.b16 %v1387
    %v1459 = vunpack.c.l.b16 %v1388
    %v1460 = vunpack.c.l.b16 %v1389
    %v1461 = vunpack.c.l.b16 %v1390
    %v1462 = vunpack.c.l.b16 %v1391
    %v1463 = vunpack.c.l.b16 %v1392
    %v1464 = vunpack.c.l.b16 %v1393
    %v1465 = vunpack.c.l.b16 %v1394
    %v1466 = vunpack.c.l.b16 %v1395
    %v1467 = vunpack.c.l.b16 %v1396
    %v1468 = vunpack.c.l.b16 %v1397
    %v1469 = vpack.c.b16 %v1438, %v1437
    %v1470 = vpack.c.b16 %v1440, %v1439
    %v1471 = vpack.c.b16 %v1442, %v1441
    %v1472 = vpack.c.b16 %v1444, %v1443
    %v1473 = vpack.c.b16 %v1446, %v1445
    %v1474 = vpack.c.b16 %v1448, %v1447
    %v1475 = vpack.c.b16 %v1450, %v1449
    %v1476 = vpack.c.b16 %v1452, %v1451
    %v1477 = vpack.c.b16 %v1454, %v1453
    %v1478 = vpack.c.b16 %v1456, %v1455
    %v1479 = vpack.c.b16 %v1458, %v1457
    %v1480 = vpack.c.b16 %v1460, %v1459
    %v1481 = vpack.c.b16 %v1462, %v1461
    %v1482 = vpack.c.b16 %v1464, %v1463
    %v1483 = vpack.c.b16 %v1466, %v1465
    %v1484 = vpack.c.b16 %v1468, %v1467
    %1501 = vmatprep.subr.bf16.mxu0 0
    %1502 = vmatpush1.bf16.msra.mxu0 %v1469
    %1503 = vmatprep.subr.bf16.mxu0 0
    %1504 = vmatpush1.bf16.msra.mxu0 %v1470
    %1505 = vmatprep.subr.bf16.mxu0 0
    %1506 = vmatpush1.bf16.msra.mxu0 %v1471
    %1507 = vmatprep.subr.bf16.mxu0 0
    %1508 = vmatpush1.bf16.msra.mxu0 %v1472
    %1509 = vmatprep.subr.bf16.mxu0 0
    %1510 = vmatpush1.bf16.msra.mxu0 %v1473
    %1511 = vmatprep.subr.bf16.mxu0 0
    %1512 = vmatpush1.bf16.msra.mxu0 %v1474
    %1513 = vmatprep.subr.bf16.mxu0 0
    %1514 = vmatpush1.bf16.msra.mxu0 %v1475
    %1515 = vmatprep.subr.bf16.mxu0 0
    %1516 = vmatpush1.bf16.msra.mxu0 %v1476
    %1517 = vmatprep.subr.bf16.mxu0 0
    %1518 = vmatpush1.bf16.msra.mxu0 %v1477
    %1519 = vmatprep.subr.bf16.mxu0 0
    %1520 = vmatpush1.bf16.msra.mxu0 %v1478
    %1521 = vmatprep.subr.bf16.mxu0 0
    %1522 = vmatpush1.bf16.msra.mxu0 %v1479
    %1523 = vmatprep.subr.bf16.mxu0 0
    %1524 = vmatpush1.bf16.msra.mxu0 %v1480
    %1525 = vmatprep.subr.bf16.mxu0 0
    %1526 = vmatpush1.bf16.msra.mxu0 %v1481
    %1527 = vmatprep.subr.bf16.mxu0 0
    %1528 = vmatpush1.bf16.msra.mxu0 %v1482
    %1529 = vmatprep.subr.bf16.mxu0 0
    %1530 = vmatpush1.bf16.msra.mxu0 %v1483
    %1531 = vmatprep.subr.bf16.mxu0 0
    %1532 = vmatpush1.bf16.msra.mxu0 %v1484
    %1533 = vmatprep.mubr.bf16.mxu0 %v1365
    %1534 = vmatmul.mubr.bf16.gmra.mrb[0].mxu0 %v1364
    %v1535 = vpop.f32.mrb[0].mxu0
    %v1536 = vadd.f32 %v1403, %v1535
    %v1537 = vpop.f32.mrb[0].mxu0
    %v1538 = vpop.f32.mrb[0].mxu0
    %v1539 = vpop.f32.mrb[0].mxu0
    %1540 = vdwg.mxu0
    %1541 = vst [vmem:[#allocation16] sm:$0xff] %v1536
    // Predicated region
    $region94: #{tpu_custom_call.1} parent=1 // pred_check
      _
    $region95: #{tpu_custom_call.1} parent=1 // pred_check_branch
      %1543 = sbr.rel (0) target = $region97
    $region96: #{tpu_custom_call.1} parent=1 // pred_region
      %s1545 = ssub.s32 128, 128
      %1546 = vsyncadd [#allocation4], %s1545
      %s1548 = sshll.u32 [#allocation16], 4
      %s1549 = int_to_ptr.vmem [resolvable:$true] %s1548
      %1551 = dma.vmem_to_hbm [thread:$0]  %s1549, 128, %s15, [#allocation4]
    $region97: #{tpu_custom_call.1} parent=1 // pred_fallthru
      _
    // Predicated region
    $region98: #{tpu_custom_call.1} parent=1 // pred_check
      _
    $region99: #{tpu_custom_call.1} parent=1 // pred_check_branch
      %1553 = sbr.rel (0) target = $region101
    $region100: #{tpu_custom_call.1} parent=1 // pred_region
      %1554 = dma.done [#allocation4], 128
    $region101: #{tpu_custom_call.1} parent=1 // pred_fallthru
      _
    %1555 = vsyncpa [#allocation3], 1
    %1556 = vsyncpa [#allocation6], 1
    %1557 = vsyncpa [#allocation9], 1
    %1558 = vsyncpa [#allocation12], 1
    %1559 = vsyncpa [#allocation15], 1
    %1560 = vsyncpa [#allocation4], 1

</llo_original>
